<compile_context>
chip_gen: v6e
topology: v6e:2x2x1
jax: 0.10.0
libtpu: 0.0.40
codegen_flags: <defaults>
</compile_context>

<pallas_src>
import functools
import math

import jax
import jax.numpy as jnp
from jax.experimental import pallas as pl
from jax.experimental.pallas import tpu as pltpu


# ---------------------------------------------------------------------------
# Pallas kernel: one TransformerEncoderLayer, one (batch, query-tile) grid step
# ---------------------------------------------------------------------------
def encoder_layer_kernel(x_kv_ref, x_q_ref,
                         wq_ref, bq_ref, wkv_ref, bkv_ref,
                         wo_ref, bo_ref, w1_ref, b1_ref, w2_ref, b2_ref,
                         g1_ref, be1_ref, g2_ref, be2_ref,
                         out_ref, *, n_head, d_k, d_v, eps):
    f32 = jnp.float32
    cdt = wq_ref.dtype                      # compute dtype of matmul operands

    x_kv = x_kv_ref[0]                      # (S,  D)  full sequence -> K/V
    x_q = x_q_ref[0]                        # (TQ, D)  query rows (f32, residual path)
    x_kv_c = x_kv.astype(cdt)
    x_q_c = x_q.astype(cdt)

    def matmul(a, w_ref, b_ref):
        # MXU matmul with f32 accumulation; bias stays f32.
        return jnp.dot(a, w_ref[...], preferred_element_type=f32) + b_ref[...]

    def split_heads(m, d):
        # (rows, H*d) -> (H, rows, d): leading-axis stack (no minor-dim shuffles),
        # feeding the batched head einsums below.
        return jnp.stack([m[:, h * d:(h + 1) * d] for h in range(n_head)], axis=0)

    # --- multi-head self-attention (heads batched) ------------------------------------
    q = split_heads(matmul(x_q_c, wq_ref, bq_ref), d_k).astype(cdt)    # (H, TQ, dk), scale folded
    kv = matmul(x_kv_c, wkv_ref, bkv_ref)                              # (S, H*(dk+dv))
    k = split_heads(kv[:, :n_head * d_k], d_k).astype(cdt)             # (H, S, dk)
    v = split_heads(kv[:, n_head * d_k:], d_v).astype(cdt)             # (H, S, dv)

    s = jnp.einsum('hqd,hkd->hqk', q, k, preferred_element_type=f32)   # (H, TQ, S)
    s = s - jnp.max(s, axis=-1, keepdims=True)
    p = jnp.exp(s)
    p = p * pl.reciprocal(jnp.sum(p, axis=-1, keepdims=True), approx=True)

    ctx = jnp.einsum('hqk,hkd->hqd', p.astype(cdt), v,
                     preferred_element_type=f32)                       # (H, TQ, dv)
    sa = jnp.einsum('hqd,hdm->hqm', ctx.astype(cdt), wo_ref[...],
                    preferred_element_type=f32)                        # (H, TQ, D)
    sa = jnp.sum(sa, axis=0) + bo_ref[...]                             # (TQ, D)

    # --- LayerNorm helper (f32) --------------------------------------------------------
    def layer_norm(val, g_ref, b_ref):
        mu = jnp.mean(val, axis=-1, keepdims=True)
        d = val - mu
        var = jnp.mean(d * d, axis=-1, keepdims=True)
        return d * jax.lax.rsqrt(var + eps) * g_ref[...] + b_ref[...]

    # --- residual + norm, feed-forward, residual + norm --------------------------------
    x1 = layer_norm(x_q + sa, g1_ref, be1_ref)                         # norm_1(x + sa)
    hdn = jnp.maximum(matmul(x1.astype(cdt), w1_ref, b1_ref), 0.0)     # (TQ, d_ff), ReLU
    ff = matmul(hdn.astype(cdt), w2_ref, b2_ref)                       # (TQ, D)
    out_ref[0] = layer_norm(x1 + ff, g2_ref, be2_ref).astype(out_ref.dtype)


# ---------------------------------------------------------------------------
# Trace-time weight prep
# ---------------------------------------------------------------------------
def _prep_layer_weights(params, *, n_head, d_k, d_v, d_model, param_dtype):
    """Fold 1/sqrt(d_k) into the q projection, fuse K/V weights, reshape the output
    projection per head, and cast matmul weights to the compute dtype. Biases and
    LayerNorm params stay f32."""
    scale = 1.0 / math.sqrt(d_k)
    wq = (params['wq'] * scale).astype(param_dtype)
    bq = params['bq'] * scale
    wkv = jnp.concatenate([params['wk'], params['wv']], axis=1).astype(param_dtype)
    bkv = jnp.concatenate([params['bk'], params['bv']], axis=1)
    wo = params['wo'].reshape(n_head, d_v, d_model).astype(param_dtype)
    w1 = params['w1'].astype(param_dtype)
    w2 = params['w2'].astype(param_dtype)
    return [wq, bq, wkv, bkv, wo, params['bo'],
            w1, params['b1'], w2, params['b2'],
            params['g1'], params['be1'], params['g2'], params['be2']]


def _default_q_tile(S):
    # 256-row query tiles feed the 256-wide v6e/v7x MXU; fall back to 128, then full S.
    if S % 256 == 0:
        return 256
    if S % 128 == 0:
        return 128
    return S


def encoder_layer(x, params, *, n_head, d_k, d_v, eps=1e-5,
                  q_tile=None, param_dtype=jnp.bfloat16):
    B, S, D = x.shape
    if q_tile is None:
        q_tile = _default_q_tile(S)
    assert S % q_tile == 0
    nq = S // q_tile

    weights = _prep_layer_weights(params, n_head=n_head, d_k=d_k, d_v=d_v,
                                  d_model=D, param_dtype=param_dtype)

    def const_spec(shape):
        # Constant block index: the weight tile is only re-DMA'd when its block index
        # changes, i.e. effectively once per pallas_call, not once per grid step.
        n = len(shape)
        return pl.BlockSpec(shape, lambda b, qi, _n=n: (0,) * _n)

    in_specs = [pl.BlockSpec((1, S, D), lambda b, qi: (b, 0, 0)),        # full seq (K/V)
                pl.BlockSpec((1, q_tile, D), lambda b, qi: (b, qi, 0))]  # query rows
    in_specs += [const_spec(w.shape) for w in weights]
    # Output blocks keep the full (lane-dense when D>=128) feature dim.
    out_spec = pl.BlockSpec((1, q_tile, D), lambda b, qi: (b, qi, 0))

    kernel = functools.partial(encoder_layer_kernel,
                               n_head=n_head, d_k=d_k, d_v=d_v, eps=eps)

    # VMEM budget: double-buffered activation blocks + resident weights + headroom,
    # capped below the 64 MiB physical VMEM of v7x.
    blk_bytes = (S * D + 2 * q_tile * D) * x.dtype.itemsize \
        + sum(w.size * w.dtype.itemsize for w in weights)
    vmem_limit = int(min(60 * 1024 * 1024, 2 * blk_bytes + 32 * 1024 * 1024))

    return pl.pallas_call(
        kernel,
        out_shape=jax.ShapeDtypeStruct((B, S, D), x.dtype),
        grid_spec=pltpu.PrefetchScalarGridSpec(
            num_scalar_prefetch=0,
            grid=(B, nq),
            in_specs=in_specs,
            out_specs=out_spec,
        ),
        compiler_params=pltpu.CompilerParams(
            dimension_semantics=("parallel", "parallel"),
            vmem_limit_bytes=vmem_limit),
    )(x, x, *weights)


def transformer_encoder(x, layer_params, *, n_head, d_k, d_v, eps=1e-5,
                        q_tile=None, param_dtype=jnp.bfloat16):
    # encoder_out_norm=None in the reference module -> no final norm.
    for p in layer_params:
        x = encoder_layer(x, p, n_head=n_head, d_k=d_k, d_v=d_v, eps=eps,
                          q_tile=q_tile, param_dtype=param_dtype)
    return x


# ---------------------------------------------------------------------------
# Deterministic parameter initialization (same shapes as the torch module)
# ---------------------------------------------------------------------------
def init_layer_params(key, d_model, n_head, d_ff):
    d_k = d_model // n_head
    d_v = d_k
    ks = jax.random.split(key, 6)

    def lin(k, fan_in, fan_out):
        bound = 1.0 / math.sqrt(fan_in)
        kw, kb = jax.random.split(k)
        w = jax.random.uniform(kw, (fan_in, fan_out), jnp.float32, -bound, bound)
        b = jax.random.uniform(kb, (1, fan_out), jnp.float32, -bound, bound)
        return w, b

    wq, bq = lin(ks[0], d_model, n_head * d_k)
    wk, bk = lin(ks[1], d_model, n_head * d_k)
    wv, bv = lin(ks[2], d_model, n_head * d_v)
    wo, bo = lin(ks[3], n_head * d_v, d_model)
    w1, b1 = lin(ks[4], d_model, d_ff)
    w2, b2 = lin(ks[5], d_ff, d_model)
    g1 = jnp.ones((1, d_model), jnp.float32)
    be1 = jnp.zeros((1, d_model), jnp.float32)
    g2 = jnp.ones((1, d_model), jnp.float32)
    be2 = jnp.zeros((1, d_model), jnp.float32)
    return dict(wq=wq, bq=bq, wk=wk, bk=bk, wv=wv, bv=bv, wo=wo, bo=bo,
                w1=w1, b1=b1, w2=w2, b2=b2, g1=g1, be1=be1, g2=g2, be2=be2)


# ---------------------------------------------------------------------------
# Pure-JAX f32 reference (mirrors the torch math, eval mode)
# ---------------------------------------------------------------------------
def ref_layer(x, p, n_head, d_k, d_v, eps=1e-5):
    B, S, D = x.shape

    def lin(v, w, b):
        return v @ w + b

    q = lin(x, p['wq'], p['bq']).reshape(B, S, n_head, d_k).transpose(0, 2, 1, 3)
    k = lin(x, p['wk'], p['bk']).reshape(B, S, n_head, d_k).transpose(0, 2, 1, 3)
    v = lin(x, p['wv'], p['bv']).reshape(B, S, n_head, d_v).transpose(0, 2, 1, 3)
    s = jnp.einsum('bhqd,bhkd->bhqk', q, k) / math.sqrt(d_k)
    a = jax.nn.softmax(s, axis=-1)
    o = jnp.einsum('bhqk,bhkd->bhqd', a, v).transpose(0, 2, 1, 3).reshape(B, S, -1)
    sa = lin(o, p['wo'], p['bo'])

    def ln(val, g, b):
        mu = val.mean(-1, keepdims=True)
        var = ((val - mu) ** 2).mean(-1, keepdims=True)
        return (val - mu) / jnp.sqrt(var + eps) * g + b

    x1 = ln(x + sa, p['g1'], p['be1'])
    ff = lin(jnp.maximum(lin(x1, p['w1'], p['b1']), 0.0), p['w2'], p['b2'])
    return ln(x1 + ff, p['g2'], p['be2'])


def ref_encoder(x, layer_params, n_head, d_k, d_v):
    for p in layer_params:
        x = ref_layer(x, p, n_head, d_k, d_v)
    return x


# ---------------------------------------------------------------------------
if __name__ == "__main__":
    B, S, d_model, n_head, d_ff, n_layer = 2, 8, 32, 4, 64, 2
    d_k = d_model // n_head
    d_v = d_k

    root = jax.random.PRNGKey(0)
    kx, *kls = jax.random.split(root, n_layer + 1)
    x = jax.random.normal(kx, (B, S, d_model), jnp.float32)
    layer_params = [init_layer_params(k, d_model, n_head, d_ff) for k in kls]

    # Exact-precision path: f32 matmul operands, checked against the pure-JAX reference
    # (tolerance covers the EUP approx-reciprocal in the softmax denominator).
    out = transformer_encoder(x, layer_params, n_head=n_head, d_k=d_k, d_v=d_v,
                              param_dtype=jnp.float32)
    out = jax.block_until_ready(out)
    ref = ref_encoder(x, layer_params, n_head, d_k, d_v)
    assert out.shape == (B, S, d_model)
    assert jnp.allclose(out, ref, atol=2e-2, rtol=2e-2), "mismatch vs reference"

    # Performance path: bf16 matmul operands (f32 accumulation). Exercised for lowering /
    # runtime health; numerical drift vs f32 is expected and only sanity-checked.
    out_bf16 = transformer_encoder(x, layer_params, n_head=n_head, d_k=d_k, d_v=d_v,
                                   param_dtype=jnp.bfloat16)
    out_bf16 = jax.block_until_ready(out_bf16)
    assert out_bf16.shape == (B, S, d_model)
    assert bool(jnp.all(jnp.isfinite(out_bf16)))

    print("KERNEL_OK")
</pallas_src>

<mosaic_0001>
module attributes {stable_mosaic.version = 11 : i64} {
  func.func @encoder_layer_kernel(%arg0: i32, %arg1: i32, %arg2: memref<1x8x32xf32, #tpu.memory_space<vmem>>, %arg3: memref<1x8x32xf32, #tpu.memory_space<vmem>>, %arg4: memref<32x32xf32, #tpu.memory_space<vmem>>, %arg5: memref<1x32xf32, #tpu.memory_space<vmem>>, %arg6: memref<32x64xf32, #tpu.memory_space<vmem>>, %arg7: memref<1x64xf32, #tpu.memory_space<vmem>>, %arg8: memref<4x8x32xf32, #tpu.memory_space<vmem>>, %arg9: memref<1x32xf32, #tpu.memory_space<vmem>>, %arg10: memref<32x64xf32, #tpu.memory_space<vmem>>, %arg11: memref<1x64xf32, #tpu.memory_space<vmem>>, %arg12: memref<64x32xf32, #tpu.memory_space<vmem>>, %arg13: memref<1x32xf32, #tpu.memory_space<vmem>>, %arg14: memref<1x32xf32, #tpu.memory_space<vmem>>, %arg15: memref<1x32xf32, #tpu.memory_space<vmem>>, %arg16: memref<1x32xf32, #tpu.memory_space<vmem>>, %arg17: memref<1x32xf32, #tpu.memory_space<vmem>>, %arg18: memref<1x8x32xf32, #tpu.memory_space<vmem>>) attributes {dimension_semantics = [#tpu.dimension_semantics<parallel>, #tpu.dimension_semantics<parallel>], iteration_bounds = array<i64: 2, 1>, scalar_prefetch = 0 : i64, scratch_operands = 0 : i64, tpu.core_type = #tpu.core_type<tc>, window_params = [{transform_indices = @transform_0, window_bounds = array<i64: 1, 8, 32>}, {transform_indices = @transform_1, window_bounds = array<i64: 1, 8, 32>}, {pipeline_mode = #tpu.pipeline_mode<synchronous>, transform_indices = @transform_2, window_bounds = array<i64: 32, 32>}, {pipeline_mode = #tpu.pipeline_mode<synchronous>, transform_indices = @transform_3, window_bounds = array<i64: 1, 32>}, {pipeline_mode = #tpu.pipeline_mode<synchronous>, transform_indices = @transform_4, window_bounds = array<i64: 32, 64>}, {pipeline_mode = #tpu.pipeline_mode<synchronous>, transform_indices = @transform_5, window_bounds = array<i64: 1, 64>}, {pipeline_mode = #tpu.pipeline_mode<synchronous>, transform_indices = @transform_6, window_bounds = array<i64: 4, 8, 32>}, {pipeline_mode = #tpu.pipeline_mode<synchronous>, transform_indices = @transform_7, window_bounds = array<i64: 1, 32>}, {pipeline_mode = #tpu.pipeline_mode<synchronous>, transform_indices = @transform_8, window_bounds = array<i64: 32, 64>}, {pipeline_mode = #tpu.pipeline_mode<synchronous>, transform_indices = @transform_9, window_bounds = array<i64: 1, 64>}, {pipeline_mode = #tpu.pipeline_mode<synchronous>, transform_indices = @transform_10, window_bounds = array<i64: 64, 32>}, {pipeline_mode = #tpu.pipeline_mode<synchronous>, transform_indices = @transform_11, window_bounds = array<i64: 1, 32>}, {pipeline_mode = #tpu.pipeline_mode<synchronous>, transform_indices = @transform_12, window_bounds = array<i64: 1, 32>}, {pipeline_mode = #tpu.pipeline_mode<synchronous>, transform_indices = @transform_13, window_bounds = array<i64: 1, 32>}, {pipeline_mode = #tpu.pipeline_mode<synchronous>, transform_indices = @transform_14, window_bounds = array<i64: 1, 32>}, {pipeline_mode = #tpu.pipeline_mode<synchronous>, transform_indices = @transform_15, window_bounds = array<i64: 1, 32>}, {transform_indices = @transform_16, window_bounds = array<i64: 1, 8, 32>}]} {
    %c0 = arith.constant 0 : index
    %c0_0 = arith.constant 0 : index
    %c0_1 = arith.constant 0 : index
    %0 = vector.load %arg2[%c0, %c0_0, %c0_1] : memref<1x8x32xf32, #tpu.memory_space<vmem>>, vector<1x8x32xf32>
    %1 = vector.shape_cast %0 : vector<1x8x32xf32> to vector<8x32xf32>
    %c0_2 = arith.constant 0 : index
    %c0_3 = arith.constant 0 : index
    %c0_4 = arith.constant 0 : index
    %2 = vector.load %arg3[%c0_2, %c0_3, %c0_4] : memref<1x8x32xf32, #tpu.memory_space<vmem>>, vector<1x8x32xf32>
    %3 = vector.shape_cast %2 : vector<1x8x32xf32> to vector<8x32xf32>
    %c0_5 = arith.constant 0 : index
    %c0_6 = arith.constant 0 : index
    %4 = vector.load %arg4[%c0_5, %c0_6] : memref<32x32xf32, #tpu.memory_space<vmem>>, vector<32x32xf32>
    %cst = arith.constant dense<0.000000e+00> : vector<8x32xf32>
    %5 = tpu.matmul %3, %4, %cst {dimension_numbers = #tpu.dot_dimension_numbers<[1], [0], [0], [1], [0, 0, 1, 1], [], []>} : vector<8x32xf32>, vector<32x32xf32>, vector<8x32xf32> -> vector<8x32xf32>
    %c0_7 = arith.constant 0 : index
    %c0_8 = arith.constant 0 : index
    %6 = vector.load %arg5[%c0_7, %c0_8] : memref<1x32xf32, #tpu.memory_space<vmem>>, vector<1x32xf32>
    %7 = vector.broadcast %6 : vector<1x32xf32> to vector<8x32xf32>
    %8 = arith.addf %5, %7 : vector<8x32xf32>
    %9 = vector.extract_strided_slice %8 {offsets = [0, 0], sizes = [8, 8], strides = [1, 1]} : vector<8x32xf32> to vector<8x8xf32>
    %10 = vector.extract_strided_slice %8 {offsets = [0, 8], sizes = [8, 8], strides = [1, 1]} : vector<8x32xf32> to vector<8x8xf32>
    %11 = vector.extract_strided_slice %8 {offsets = [0, 16], sizes = [8, 8], strides = [1, 1]} : vector<8x32xf32> to vector<8x8xf32>
    %12 = vector.extract_strided_slice %8 {offsets = [0, 24], sizes = [8, 8], strides = [1, 1]} : vector<8x32xf32> to vector<8x8xf32>
    %13 = vector.shape_cast %9 : vector<8x8xf32> to vector<1x8x8xf32>
    %14 = vector.shape_cast %10 : vector<8x8xf32> to vector<1x8x8xf32>
    %15 = vector.shape_cast %11 : vector<8x8xf32> to vector<1x8x8xf32>
    %16 = vector.shape_cast %12 : vector<8x8xf32> to vector<1x8x8xf32>
    %17 = tpu.concatenate %13, %14, %15, %16 in 0 : vector<1x8x8xf32>, vector<1x8x8xf32>, vector<1x8x8xf32>, vector<1x8x8xf32> -> vector<4x8x8xf32>
    %c0_9 = arith.constant 0 : index
    %c0_10 = arith.constant 0 : index
    %18 = vector.load %arg6[%c0_9, %c0_10] : memref<32x64xf32, #tpu.memory_space<vmem>>, vector<32x64xf32>
    %cst_11 = arith.constant dense<0.000000e+00> : vector<8x64xf32>
    %19 = tpu.matmul %1, %18, %cst_11 {dimension_numbers = #tpu.dot_dimension_numbers<[1], [0], [0], [1], [0, 0, 1, 1], [], []>} : vector<8x32xf32>, vector<32x64xf32>, vector<8x64xf32> -> vector<8x64xf32>
    %c0_12 = arith.constant 0 : index
    %c0_13 = arith.constant 0 : index
    %20 = vector.load %arg7[%c0_12, %c0_13] : memref<1x64xf32, #tpu.memory_space<vmem>>, vector<1x64xf32>
    %21 = vector.broadcast %20 : vector<1x64xf32> to vector<8x64xf32>
    %22 = arith.addf %19, %21 : vector<8x64xf32>
    %23 = vector.extract_strided_slice %22 {offsets = [0, 0], sizes = [8, 32], strides = [1, 1]} : vector<8x64xf32> to vector<8x32xf32>
    %24 = vector.extract_strided_slice %23 {offsets = [0, 0], sizes = [8, 8], strides = [1, 1]} : vector<8x32xf32> to vector<8x8xf32>
    %25 = vector.extract_strided_slice %23 {offsets = [0, 8], sizes = [8, 8], strides = [1, 1]} : vector<8x32xf32> to vector<8x8xf32>
    %26 = vector.extract_strided_slice %23 {offsets = [0, 16], sizes = [8, 8], strides = [1, 1]} : vector<8x32xf32> to vector<8x8xf32>
    %27 = vector.extract_strided_slice %23 {offsets = [0, 24], sizes = [8, 8], strides = [1, 1]} : vector<8x32xf32> to vector<8x8xf32>
    %28 = vector.shape_cast %24 : vector<8x8xf32> to vector<1x8x8xf32>
    %29 = vector.shape_cast %25 : vector<8x8xf32> to vector<1x8x8xf32>
    %30 = vector.shape_cast %26 : vector<8x8xf32> to vector<1x8x8xf32>
    %31 = vector.shape_cast %27 : vector<8x8xf32> to vector<1x8x8xf32>
    %32 = tpu.concatenate %28, %29, %30, %31 in 0 : vector<1x8x8xf32>, vector<1x8x8xf32>, vector<1x8x8xf32>, vector<1x8x8xf32> -> vector<4x8x8xf32>
    %33 = vector.extract_strided_slice %22 {offsets = [0, 32], sizes = [8, 32], strides = [1, 1]} : vector<8x64xf32> to vector<8x32xf32>
    %34 = vector.extract_strided_slice %33 {offsets = [0, 0], sizes = [8, 8], strides = [1, 1]} : vector<8x32xf32> to vector<8x8xf32>
    %35 = vector.extract_strided_slice %33 {offsets = [0, 8], sizes = [8, 8], strides = [1, 1]} : vector<8x32xf32> to vector<8x8xf32>
    %36 = vector.extract_strided_slice %33 {offsets = [0, 16], sizes = [8, 8], strides = [1, 1]} : vector<8x32xf32> to vector<8x8xf32>
    %37 = vector.extract_strided_slice %33 {offsets = [0, 24], sizes = [8, 8], strides = [1, 1]} : vector<8x32xf32> to vector<8x8xf32>
    %38 = vector.shape_cast %34 : vector<8x8xf32> to vector<1x8x8xf32>
    %39 = vector.shape_cast %35 : vector<8x8xf32> to vector<1x8x8xf32>
    %40 = vector.shape_cast %36 : vector<8x8xf32> to vector<1x8x8xf32>
    %41 = vector.shape_cast %37 : vector<8x8xf32> to vector<1x8x8xf32>
    %42 = tpu.concatenate %38, %39, %40, %41 in 0 : vector<1x8x8xf32>, vector<1x8x8xf32>, vector<1x8x8xf32>, vector<1x8x8xf32> -> vector<4x8x8xf32>
    "tpu.trace_start"() <{level = 10 : i32, message = "hqd,hkd->hqk"}> : () -> ()
    %cst_14 = arith.constant dense<0.000000e+00> : vector<4x8x8xf32>
    %43 = tpu.matmul %17, %32, %cst_14 {dimension_numbers = #tpu.dot_dimension_numbers<[2], [2], [1], [1], [0, 0, 0, 1, 1, 1], [0], [0]>} : vector<4x8x8xf32>, vector<4x8x8xf32>, vector<4x8x8xf32> -> vector<4x8x8xf32>
    "tpu.trace_stop"() : () -> ()
    %cst_15 = arith.constant dense<0xFF800000> : vector<4x8xf32>
    %44 = vector.multi_reduction <maximumf>, %43, %cst_15 [2] : vector<4x8x8xf32> to vector<4x8xf32>
    %45 = vector.shape_cast %44 : vector<4x8xf32> to vector<4x8x1xf32>
    %46 = vector.broadcast %45 : vector<4x8x1xf32> to vector<4x8x8xf32>
    %47 = arith.subf %43, %46 : vector<4x8x8xf32>
    %48 = math.exp %47 : vector<4x8x8xf32>
    %cst_16 = arith.constant dense<0.000000e+00> : vector<4x8xf32>
    %49 = vector.multi_reduction <add>, %48, %cst_16 [2] : vector<4x8x8xf32> to vector<4x8xf32>
    %50 = vector.shape_cast %49 : vector<4x8xf32> to vector<4x8x1xf32>
    %51 = tpu.reciprocal %50 {approx = true} : vector<4x8x1xf32> -> vector<4x8x1xf32>
    %52 = vector.broadcast %51 : vector<4x8x1xf32> to vector<4x8x8xf32>
    %53 = arith.mulf %48, %52 : vector<4x8x8xf32>
    "tpu.trace_start"() <{level = 10 : i32, message = "hqk,hkd->hqd"}> : () -> ()
    %cst_17 = arith.constant dense<0.000000e+00> : vector<4x8x8xf32>
    %54 = tpu.matmul %53, %42, %cst_17 {dimension_numbers = #tpu.dot_dimension_numbers<[2], [1], [1], [2], [0, 0, 0, 1, 1, 2], [0], [0]>} : vector<4x8x8xf32>, vector<4x8x8xf32>, vector<4x8x8xf32> -> vector<4x8x8xf32>
    "tpu.trace_stop"() : () -> ()
    %c0_18 = arith.constant 0 : index
    %c0_19 = arith.constant 0 : index
    %c0_20 = arith.constant 0 : index
    %55 = vector.load %arg8[%c0_18, %c0_19, %c0_20] : memref<4x8x32xf32, #tpu.memory_space<vmem>>, vector<4x8x32xf32>
    "tpu.trace_start"() <{level = 10 : i32, message = "hqd,hdm->hqm"}> : () -> ()
    %cst_21 = arith.constant dense<0.000000e+00> : vector<4x8x32xf32>
    %56 = tpu.matmul %54, %55, %cst_21 {dimension_numbers = #tpu.dot_dimension_numbers<[2], [1], [1], [2], [0, 0, 0, 1, 1, 2], [0], [0]>} : vector<4x8x8xf32>, vector<4x8x32xf32>, vector<4x8x32xf32> -> vector<4x8x32xf32>
    "tpu.trace_stop"() : () -> ()
    %cst_22 = arith.constant dense<0.000000e+00> : vector<8x32xf32>
    %57 = vector.multi_reduction <add>, %56, %cst_22 [0] : vector<4x8x32xf32> to vector<8x32xf32>
    %c0_23 = arith.constant 0 : index
    %c0_24 = arith.constant 0 : index
    %58 = vector.load %arg9[%c0_23, %c0_24] : memref<1x32xf32, #tpu.memory_space<vmem>>, vector<1x32xf32>
    %59 = vector.broadcast %58 : vector<1x32xf32> to vector<8x32xf32>
    %60 = arith.addf %57, %59 : vector<8x32xf32>
    %61 = arith.addf %3, %60 : vector<8x32xf32>
    %cst_25 = arith.constant dense<0.000000e+00> : vector<8xf32>
    %62 = vector.multi_reduction <add>, %61, %cst_25 [1] : vector<8x32xf32> to vector<8xf32>
    %63 = vector.shape_cast %62 : vector<8xf32> to vector<8x1xf32>
    %cst_26 = arith.constant 3.200000e+01 : f32
    %64 = vector.broadcast %cst_26 : f32 to vector<8x1xf32>
    %65 = arith.divf %63, %64 : vector<8x1xf32>
    %66 = vector.broadcast %65 : vector<8x1xf32> to vector<8x32xf32>
    %67 = arith.subf %61, %66 : vector<8x32xf32>
    %68 = arith.mulf %67, %67 : vector<8x32xf32>
    %cst_27 = arith.constant dense<0.000000e+00> : vector<8xf32>
    %69 = vector.multi_reduction <add>, %68, %cst_27 [1] : vector<8x32xf32> to vector<8xf32>
    %70 = vector.shape_cast %69 : vector<8xf32> to vector<8x1xf32>
    %cst_28 = arith.constant 3.200000e+01 : f32
    %71 = vector.broadcast %cst_28 : f32 to vector<8x1xf32>
    %72 = arith.divf %70, %71 : vector<8x1xf32>
    %cst_29 = arith.constant 9.99999974E-6 : f32
    %73 = vector.broadcast %cst_29 : f32 to vector<8x1xf32>
    %74 = arith.addf %72, %73 : vector<8x1xf32>
    %75 = math.rsqrt %74 : vector<8x1xf32>
    %76 = vector.broadcast %75 : vector<8x1xf32> to vector<8x32xf32>
    %77 = arith.mulf %67, %76 : vector<8x32xf32>
    %c0_30 = arith.constant 0 : index
    %c0_31 = arith.constant 0 : index
    %78 = vector.load %arg14[%c0_30, %c0_31] : memref<1x32xf32, #tpu.memory_space<vmem>>, vector<1x32xf32>
    %79 = vector.broadcast %78 : vector<1x32xf32> to vector<8x32xf32>
    %80 = arith.mulf %77, %79 : vector<8x32xf32>
    %c0_32 = arith.constant 0 : index
    %c0_33 = arith.constant 0 : index
    %81 = vector.load %arg15[%c0_32, %c0_33] : memref<1x32xf32, #tpu.memory_space<vmem>>, vector<1x32xf32>
    %82 = vector.broadcast %81 : vector<1x32xf32> to vector<8x32xf32>
    %83 = arith.addf %80, %82 : vector<8x32xf32>
    %c0_34 = arith.constant 0 : index
    %c0_35 = arith.constant 0 : index
    %84 = vector.load %arg10[%c0_34, %c0_35] : memref<32x64xf32, #tpu.memory_space<vmem>>, vector<32x64xf32>
    %cst_36 = arith.constant dense<0.000000e+00> : vector<8x64xf32>
    %85 = tpu.matmul %83, %84, %cst_36 {dimension_numbers = #tpu.dot_dimension_numbers<[1], [0], [0], [1], [0, 0, 1, 1], [], []>} : vector<8x32xf32>, vector<32x64xf32>, vector<8x64xf32> -> vector<8x64xf32>
    %c0_37 = arith.constant 0 : index
    %c0_38 = arith.constant 0 : index
    %86 = vector.load %arg11[%c0_37, %c0_38] : memref<1x64xf32, #tpu.memory_space<vmem>>, vector<1x64xf32>
    %87 = vector.broadcast %86 : vector<1x64xf32> to vector<8x64xf32>
    %88 = arith.addf %85, %87 : vector<8x64xf32>
    %cst_39 = arith.constant 0.000000e+00 : f32
    %89 = vector.broadcast %cst_39 : f32 to vector<8x64xf32>
    %90 = arith.maximumf %88, %89 : vector<8x64xf32>
    %c0_40 = arith.constant 0 : index
    %c0_41 = arith.constant 0 : index
    %91 = vector.load %arg12[%c0_40, %c0_41] : memref<64x32xf32, #tpu.memory_space<vmem>>, vector<64x32xf32>
    %cst_42 = arith.constant dense<0.000000e+00> : vector<8x32xf32>
    %92 = tpu.matmul %90, %91, %cst_42 {dimension_numbers = #tpu.dot_dimension_numbers<[1], [0], [0], [1], [0, 0, 1, 1], [], []>} : vector<8x64xf32>, vector<64x32xf32>, vector<8x32xf32> -> vector<8x32xf32>
    %c0_43 = arith.constant 0 : index
    %c0_44 = arith.constant 0 : index
    %93 = vector.load %arg13[%c0_43, %c0_44] : memref<1x32xf32, #tpu.memory_space<vmem>>, vector<1x32xf32>
    %94 = vector.broadcast %93 : vector<1x32xf32> to vector<8x32xf32>
    %95 = arith.addf %92, %94 : vector<8x32xf32>
    %96 = arith.addf %83, %95 : vector<8x32xf32>
    %cst_45 = arith.constant dense<0.000000e+00> : vector<8xf32>
    %97 = vector.multi_reduction <add>, %96, %cst_45 [1] : vector<8x32xf32> to vector<8xf32>
    %98 = vector.shape_cast %97 : vector<8xf32> to vector<8x1xf32>
    %cst_46 = arith.constant 3.200000e+01 : f32
    %99 = vector.broadcast %cst_46 : f32 to vector<8x1xf32>
    %100 = arith.divf %98, %99 : vector<8x1xf32>
    %101 = vector.broadcast %100 : vector<8x1xf32> to vector<8x32xf32>
    %102 = arith.subf %96, %101 : vector<8x32xf32>
    %103 = arith.mulf %102, %102 : vector<8x32xf32>
    %cst_47 = arith.constant dense<0.000000e+00> : vector<8xf32>
    %104 = vector.multi_reduction <add>, %103, %cst_47 [1] : vector<8x32xf32> to vector<8xf32>
    %105 = vector.shape_cast %104 : vector<8xf32> to vector<8x1xf32>
    %cst_48 = arith.constant 3.200000e+01 : f32
    %106 = vector.broadcast %cst_48 : f32 to vector<8x1xf32>
    %107 = arith.divf %105, %106 : vector<8x1xf32>
    %cst_49 = arith.constant 9.99999974E-6 : f32
    %108 = vector.broadcast %cst_49 : f32 to vector<8x1xf32>
    %109 = arith.addf %107, %108 : vector<8x1xf32>
    %110 = math.rsqrt %109 : vector<8x1xf32>
    %111 = vector.broadcast %110 : vector<8x1xf32> to vector<8x32xf32>
    %112 = arith.mulf %102, %111 : vector<8x32xf32>
    %c0_50 = arith.constant 0 : index
    %c0_51 = arith.constant 0 : index
    %113 = vector.load %arg16[%c0_50, %c0_51] : memref<1x32xf32, #tpu.memory_space<vmem>>, vector<1x32xf32>
    %114 = vector.broadcast %113 : vector<1x32xf32> to vector<8x32xf32>
    %115 = arith.mulf %112, %114 : vector<8x32xf32>
    %c0_52 = arith.constant 0 : index
    %c0_53 = arith.constant 0 : index
    %116 = vector.load %arg17[%c0_52, %c0_53] : memref<1x32xf32, #tpu.memory_space<vmem>>, vector<1x32xf32>
    %117 = vector.broadcast %116 : vector<1x32xf32> to vector<8x32xf32>
    %118 = arith.addf %115, %117 : vector<8x32xf32>
    %c0_54 = arith.constant 0 : index
    %c0_55 = arith.constant 0 : index
    %c0_56 = arith.constant 0 : index
    %119 = vector.load %arg18[%c0_54, %c0_55, %c0_56] : memref<1x8x32xf32, #tpu.memory_space<vmem>>, vector<1x8x32xf32>
    %120 = vector.shape_cast %119 : vector<1x8x32xf32> to vector<8x32xf32>
    %121 = vector.shape_cast %118 : vector<8x32xf32> to vector<1x8x32xf32>
    tpu.vector_store %arg18[%c0_54, %c0_55, %c0_56], %121 {strides = array<i32>} : memref<1x8x32xf32, #tpu.memory_space<vmem>>, vector<1x8x32xf32>,
    return
  }
  func.func @transform_0(%arg0: i32, %arg1: i32) -> (i32, i32, i32) {
    %c0_i32 = arith.constant 0 : i32
    %c0_i32_0 = arith.constant 0 : i32
    %c0_i32_1 = arith.constant 0 : i32
    return %arg0, %c0_i32, %c0_i32_0 : i32, i32, i32
  }
  func.func @transform_1(%arg0: i32, %arg1: i32) -> (i32, i32, i32) {
    %c0_i32 = arith.constant 0 : i32
    %c0_i32_0 = arith.constant 0 : i32
    return %arg0, %arg1, %c0_i32 : i32, i32, i32
  }
  func.func @transform_2(%arg0: i32, %arg1: i32) -> (i32, i32) {
    %c0_i32 = arith.constant 0 : i32
    %c0_i32_0 = arith.constant 0 : i32
    %c0_i32_1 = arith.constant 0 : i32
    return %c0_i32, %c0_i32_0 : i32, i32
  }
  func.func @transform_3(%arg0: i32, %arg1: i32) -> (i32, i32) {
    %c0_i32 = arith.constant 0 : i32
    %c0_i32_0 = arith.constant 0 : i32
    %c0_i32_1 = arith.constant 0 : i32
    return %c0_i32, %c0_i32_0 : i32, i32
  }
  func.func @transform_4(%arg0: i32, %arg1: i32) -> (i32, i32) {
    %c0_i32 = arith.constant 0 : i32
    %c0_i32_0 = arith.constant 0 : i32
    %c0_i32_1 = arith.constant 0 : i32
    return %c0_i32, %c0_i32_0 : i32, i32
  }
  func.func @transform_5(%arg0: i32, %arg1: i32) -> (i32, i32) {
    %c0_i32 = arith.constant 0 : i32
    %c0_i32_0 = arith.constant 0 : i32
    %c0_i32_1 = arith.constant 0 : i32
    return %c0_i32, %c0_i32_0 : i32, i32
  }
  func.func @transform_6(%arg0: i32, %arg1: i32) -> (i32, i32, i32) {
    %c0_i32 = arith.constant 0 : i32
    %c0_i32_0 = arith.constant 0 : i32
    %c0_i32_1 = arith.constant 0 : i32
    %c0_i32_2 = arith.constant 0 : i32
    return %c0_i32, %c0_i32_0, %c0_i32_1 : i32, i32, i32
  }
  func.func @transform_7(%arg0: i32, %arg1: i32) -> (i32, i32) {
    %c0_i32 = arith.constant 0 : i32
    %c0_i32_0 = arith.constant 0 : i32
    %c0_i32_1 = arith.constant 0 : i32
    return %c0_i32, %c0_i32_0 : i32, i32
  }
  func.func @transform_8(%arg0: i32, %arg1: i32) -> (i32, i32) {
    %c0_i32 = arith.constant 0 : i32
    %c0_i32_0 = arith.constant 0 : i32
    %c0_i32_1 = arith.constant 0 : i32
    return %c0_i32, %c0_i32_0 : i32, i32
  }
  func.func @transform_9(%arg0: i32, %arg1: i32) -> (i32, i32) {
    %c0_i32 = arith.constant 0 : i32
    %c0_i32_0 = arith.constant 0 : i32
    %c0_i32_1 = arith.constant 0 : i32
    return %c0_i32, %c0_i32_0 : i32, i32
  }
  func.func @transform_10(%arg0: i32, %arg1: i32) -> (i32, i32) {
    %c0_i32 = arith.constant 0 : i32
    %c0_i32_0 = arith.constant 0 : i32
    %c0_i32_1 = arith.constant 0 : i32
    return %c0_i32, %c0_i32_0 : i32, i32
  }
  func.func @transform_11(%arg0: i32, %arg1: i32) -> (i32, i32) {
    %c0_i32 = arith.constant 0 : i32
    %c0_i32_0 = arith.constant 0 : i32
    %c0_i32_1 = arith.constant 0 : i32
    return %c0_i32, %c0_i32_0 : i32, i32
  }
  func.func @transform_12(%arg0: i32, %arg1: i32) -> (i32, i32) {
    %c0_i32 = arith.constant 0 : i32
    %c0_i32_0 = arith.constant 0 : i32
    %c0_i32_1 = arith.constant 0 : i32
    return %c0_i32, %c0_i32_0 : i32, i32
  }
  func.func @transform_13(%arg0: i32, %arg1: i32) -> (i32, i32) {
    %c0_i32 = arith.constant 0 : i32
    %c0_i32_0 = arith.constant 0 : i32
    %c0_i32_1 = arith.constant 0 : i32
    return %c0_i32, %c0_i32_0 : i32, i32
  }
  func.func @transform_14(%arg0: i32, %arg1: i32) -> (i32, i32) {
    %c0_i32 = arith.constant 0 : i32
    %c0_i32_0 = arith.constant 0 : i32
    %c0_i32_1 = arith.constant 0 : i32
    return %c0_i32, %c0_i32_0 : i32, i32
  }
  func.func @transform_15(%arg0: i32, %arg1: i32) -> (i32, i32) {
    %c0_i32 = arith.constant 0 : i32
    %c0_i32_0 = arith.constant 0 : i32
    %c0_i32_1 = arith.constant 0 : i32
    return %c0_i32, %c0_i32_0 : i32, i32
  }
  func.func @transform_16(%arg0: i32, %arg1: i32) -> (i32, i32, i32) {
    %c0_i32 = arith.constant 0 : i32
    %c0_i32_0 = arith.constant 0 : i32
    return %arg0, %arg1, %c0_i32 : i32, i32, i32
  }
}

</mosaic_0001>

<llo_original>
// kernel: tpu_custom_call.1
$region0: #{tpu_custom_call.1}
  #allocation0 [shape = 'u32[]', space=smem, size = 0x4, offset = 0x4, fixed_abs, tag = 'smem constant byte address 0x4 - core index']
  #allocation1 [shape = 'u32[144,128]{1,0:T(1,128)}', space=vmem, size = 0x12000, scoped, tag = 'internal scratch']
  %s0 = inlined_call_operand.hbm [shape: f32[2,8,32], index: 0, kind: input, shape index: {}]
  %s1 = inlined_call_operand.hbm [shape: f32[2,8,32], index: 1, kind: input, shape index: {}]
  %s2 = inlined_call_operand.vmem [shape: f32[32,32], index: 2, kind: input, shape index: {}]
  %s3 = inlined_call_operand.vmem [shape: f32[1,32], index: 3, kind: input, shape index: {}]
  %s4 = inlined_call_operand.vmem [shape: f32[32,64], index: 4, kind: input, shape index: {}]
  %s5 = inlined_call_operand.vmem [shape: f32[1,64], index: 5, kind: input, shape index: {}]
  %s6 = inlined_call_operand.vmem [shape: f32[4,8,32], index: 6, kind: input, shape index: {}]
  %s7 = inlined_call_operand.vmem [shape: f32[1,32], index: 7, kind: input, shape index: {}]
  %s8 = inlined_call_operand.hbm [shape: f32[32,64], index: 8, kind: input, shape index: {}]
  %s9 = inlined_call_operand.vmem [shape: f32[1,64], index: 9, kind: input, shape index: {}]
  %s10 = inlined_call_operand.vmem [shape: f32[64,32], index: 10, kind: input, shape index: {}]
  %s11 = inlined_call_operand.vmem [shape: f32[1,32], index: 11, kind: input, shape index: {}]
  %s12 = inlined_call_operand.vmem [shape: f32[1,32], index: 12, kind: input, shape index: {}]
  %s13 = inlined_call_operand.vmem [shape: f32[1,32], index: 13, kind: input, shape index: {}]
  %s14 = inlined_call_operand.vmem [shape: f32[1,32], index: 14, kind: input, shape index: {}]
  %s15 = inlined_call_operand.vmem [shape: f32[1,32], index: 15, kind: input, shape index: {}]
  %s16 = inlined_call_operand.hbm [shape: f32[2,8,32], index: 16, kind: output, shape index: {}]
  %s17 = sld [smem:[#allocation0]]
  $region109: #{tpu_custom_call.1} parent=0
    _
  %s19 = ssub.s32 1, %s17
  %s20 = scalar_select 0, %s19, %s17
  $region1: #{tpu_custom_call.1} parent=0
    #allocation2 [shape = 'u8[8192]{0}', space=vmem, size = 0x2000, scoped, tag = 'input window, operand 0']
    #allocation3 [shape = 's32[2]{0}', space=sflag, size = 0x8, scoped, tag = 'scoped memory for tpu_custom_call.1']
    #allocation4 [shape = 's32[2]{0}', space=sflag, size = 0x8, scoped, tag = 'scoped memory for tpu_custom_call.1']
    #allocation5 [shape = 'u8[8192]{0}', space=vmem, size = 0x2000, scoped, tag = 'input window, operand 1']
    #allocation6 [shape = 's32[2]{0}', space=sflag, size = 0x8, scoped, tag = 'scoped memory for tpu_custom_call.1']
    #allocation7 [shape = 'u8[16384]{0}', space=vmem, size = 0x4000, scoped, tag = 'input window, operand 8, single buffered']
    #allocation8 [shape = 'u8[8192]{0}', space=vmem, size = 0x2000, scoped, tag = 'output window, operand 0']
    %21 = vsyncpa [#allocation3], 0
    %s22 = scalar_lea.sflag [#allocation3], 1
    %23 = vsyncpa %s22, 0
    %24 = vsyncpa [#allocation6], 0
    %s25 = scalar_lea.sflag [#allocation6], 1
    %26 = vsyncpa %s25, 0
    %27 = vsyncpa [#allocation4], 0
    %s28 = scalar_lea.sflag [#allocation4], 1
    %29 = vsyncpa %s28, 0
    loop: start=0, step=1, limit=4
    $region2: #{tpu_custom_call.1} parent=1 // loop_pre_header
      _
    $region3: #{tpu_custom_call.1} parent=1 // loop_header
      %s31 = sphi 0, %s35
      %p32 = scmp.ge.s32.totalorder %s31, 4
      %s38 = sphi 0, %s50
      %s39 = sphi 0, %s46
      %s40 = sphi 0, %s38
      %s41 = sphi 0, %s39
      %s42 = sphi 0, %s40
      %s43 = sphi 0, %s41
      %s53 = sphi 0, %s55
      %s56 = sphi 0, %s53
      %s57 = sphi 0, %s56
      %s73 = sphi 0, %s57
      %s81 = sphi 0, %s83
      %s84 = sphi 0, %s81
      %s85 = sphi 0, %s84
      %s101 = sphi 0, %s85
      %s105 = sphi 0, %s105
      %s107 = sphi 0, %s105
      %s108 = sphi 0, %s107
      %s122 = sphi 0, %s108
      %s126 = sphi 0, %s126
      %s128 = sphi 0, %s126
      %s129 = sphi 0, %s128
      %s143 = sphi 0, %s129
      %s147 = sphi 0, %s147
      %s149 = sphi 0, %s147
      %s150 = sphi 0, %s149
      %s164 = sphi 0, %s150
      %s168 = sphi 0, %s168
      %s170 = sphi 0, %s168
      %s171 = sphi 0, %s170
      %s185 = sphi 0, %s171
      %s189 = sphi 0, %s189
      %s191 = sphi 0, %s189
      %s192 = sphi 0, %s191
      %s206 = sphi 0, %s192
      %s210 = sphi 0, %s210
      %s212 = sphi 0, %s210
      %s213 = sphi 0, %s212
      %s227 = sphi 0, %s213
      %s231 = sphi 0, %s231
      %s233 = sphi 0, %s231
      %s234 = sphi 0, %s233
      %s248 = sphi 0, %s234
      %s252 = sphi 0, %s252
      %s254 = sphi 0, %s252
      %s255 = sphi 0, %s254
      %s269 = sphi 0, %s255
      %s273 = sphi 0, %s273
      %s275 = sphi 0, %s273
      %s276 = sphi 0, %s275
      %s290 = sphi 0, %s276
      %s294 = sphi 0, %s294
      %s296 = sphi 0, %s294
      %s297 = sphi 0, %s296
      %s311 = sphi 0, %s297
      %s315 = sphi 0, %s315
      %s317 = sphi 0, %s315
      %s318 = sphi 0, %s317
      %s332 = sphi 0, %s318
      %s336 = sphi 0, %s336
      %s338 = sphi 0, %s336
      %s339 = sphi 0, %s338
      %s353 = sphi 0, %s339
      %s357 = sphi 0, %s357
      %s359 = sphi 0, %s357
      %s360 = sphi 0, %s359
      %s374 = sphi 0, %s360
      %s378 = sphi 0, %s378
      %s380 = sphi 0, %s378
      %s381 = sphi 0, %s380
      %s395 = sphi 0, %s381
      %s403 = sphi 0, %s405
      %s406 = sphi 0, %s403
      %s407 = sphi 0, %s406
      %s423 = sphi 0, %s407
    $region4: #{tpu_custom_call.1} parent=1 // loop_header_branch
      %34 = sbr.rel (%p32) target = $region8
    $region5: #{tpu_custom_call.1} parent=1 // loop_body
      %s36 = ssub.s32 %s31, 1
      %s37 = ssub.s32 %s31, 2
      %s44 = sadd.s32 1, %s39
      %p45 = scmp.ge.s32.totalorder %s44, 1
      %s46 = scalar_select %p45, 0, %s44
      %s47 = sadd.s32 1, %s38
      %s48 = scalar_select %p45, %s47, %s38
      %p49 = scmp.ge.s32.totalorder %s48, 2
      %s50 = scalar_select %p49, 0, %s48
      %s51 = ssub.s32 %s38, %s50
      %p52 = scmp.eq.s32.totalorder %s51, 0
      %s54 = sadd.s32 %s53, 1
      %s55 = scalar_select %p52, %s53, %s54
      %p58 = pneg %p52
      %p59 = scmp.eq.s32.totalorder %s31, 1
      %p60 = por %p58, %p59
      %p61 = scmp.ne.s32.totalorder %s53, %s56
      %p62 = scmp.eq.s32.totalorder %s31, 0
      %p63 = por %p61, %p62
      %p64 = scmp.ne.s32.totalorder %s53, %s56
      %p65 = scmp.eq.s32.totalorder %s36, 1
      %p66 = por %p64, %p65
      %p67 = scmp.ne.s32.totalorder %s56, %s57
      %p68 = scmp.eq.s32.totalorder %s36, 0
      %p69 = por %p67, %p68
      %p70 = scmp.ne.s32.totalorder %s56, %s57
      %p71 = scmp.eq.s32.totalorder %s37, 1
      %p72 = por %p70, %p71
      %p74 = scmp.ne.s32.totalorder %s57, %s73
      %p75 = scmp.eq.s32.totalorder %s37, 0
      %p76 = por %p74, %p75
      %s77 = ssub.s32 %s38, %s50
      %s78 = ssub.s32 %s39, %s46
      %s79 = sor.u32 %s77, %s78
      %p80 = scmp.eq.s32.totalorder %s79, 0
      %s82 = sadd.s32 %s81, 1
      %s83 = scalar_select %p80, %s81, %s82
      %p86 = pneg %p80
      %p87 = scmp.eq.s32.totalorder %s31, 1
      %p88 = por %p86, %p87
      %p89 = scmp.ne.s32.totalorder %s81, %s84
      %p90 = scmp.eq.s32.totalorder %s31, 0
      %p91 = por %p89, %p90
      %p92 = scmp.ne.s32.totalorder %s81, %s84
      %p93 = scmp.eq.s32.totalorder %s36, 1
      %p94 = por %p92, %p93
      %p95 = scmp.ne.s32.totalorder %s84, %s85
      %p96 = scmp.eq.s32.totalorder %s36, 0
      %p97 = por %p95, %p96
      %p98 = scmp.ne.s32.totalorder %s84, %s85
      %p99 = scmp.eq.s32.totalorder %s37, 1
      %p100 = por %p98, %p99
      %p102 = scmp.ne.s32.totalorder %s85, %s101
      %p103 = scmp.eq.s32.totalorder %s37, 0
      %p104 = por %p102, %p103
      %s106 = sadd.s32 %s105, 1
      %p109 = scmp.eq.s32.totalorder %s31, 1
      %p110 = scmp.ne.s32.totalorder %s105, %s107
      %p111 = scmp.eq.s32.totalorder %s31, 0
      %p112 = por %p110, %p111
      %p113 = scmp.ne.s32.totalorder %s105, %s107
      %p114 = scmp.eq.s32.totalorder %s36, 1
      %p115 = por %p113, %p114
      %p116 = scmp.ne.s32.totalorder %s107, %s108
      %p117 = scmp.eq.s32.totalorder %s36, 0
      %p118 = por %p116, %p117
      %p119 = scmp.ne.s32.totalorder %s107, %s108
      %p120 = scmp.eq.s32.totalorder %s37, 1
      %p121 = por %p119, %p120
      %p123 = scmp.ne.s32.totalorder %s108, %s122
      %p124 = scmp.eq.s32.totalorder %s37, 0
      %p125 = por %p123, %p124
      %s127 = sadd.s32 %s126, 1
      %p130 = scmp.eq.s32.totalorder %s31, 1
      %p131 = scmp.ne.s32.totalorder %s126, %s128
      %p132 = scmp.eq.s32.totalorder %s31, 0
      %p133 = por %p131, %p132
      %p134 = scmp.ne.s32.totalorder %s126, %s128
      %p135 = scmp.eq.s32.totalorder %s36, 1
      %p136 = por %p134, %p135
      %p137 = scmp.ne.s32.totalorder %s128, %s129
      %p138 = scmp.eq.s32.totalorder %s36, 0
      %p139 = por %p137, %p138
      %p140 = scmp.ne.s32.totalorder %s128, %s129
      %p141 = scmp.eq.s32.totalorder %s37, 1
      %p142 = por %p140, %p141
      %p144 = scmp.ne.s32.totalorder %s129, %s143
      %p145 = scmp.eq.s32.totalorder %s37, 0
      %p146 = por %p144, %p145
      %s148 = sadd.s32 %s147, 1
      %p151 = scmp.eq.s32.totalorder %s31, 1
      %p152 = scmp.ne.s32.totalorder %s147, %s149
      %p153 = scmp.eq.s32.totalorder %s31, 0
      %p154 = por %p152, %p153
      %p155 = scmp.ne.s32.totalorder %s147, %s149
      %p156 = scmp.eq.s32.totalorder %s36, 1
      %p157 = por %p155, %p156
      %p158 = scmp.ne.s32.totalorder %s149, %s150
      %p159 = scmp.eq.s32.totalorder %s36, 0
      %p160 = por %p158, %p159
      %p161 = scmp.ne.s32.totalorder %s149, %s150
      %p162 = scmp.eq.s32.totalorder %s37, 1
      %p163 = por %p161, %p162
      %p165 = scmp.ne.s32.totalorder %s150, %s164
      %p166 = scmp.eq.s32.totalorder %s37, 0
      %p167 = por %p165, %p166
      %s169 = sadd.s32 %s168, 1
      %p172 = scmp.eq.s32.totalorder %s31, 1
      %p173 = scmp.ne.s32.totalorder %s168, %s170
      %p174 = scmp.eq.s32.totalorder %s31, 0
      %p175 = por %p173, %p174
      %p176 = scmp.ne.s32.totalorder %s168, %s170
      %p177 = scmp.eq.s32.totalorder %s36, 1
      %p178 = por %p176, %p177
      %p179 = scmp.ne.s32.totalorder %s170, %s171
      %p180 = scmp.eq.s32.totalorder %s36, 0
      %p181 = por %p179, %p180
      %p182 = scmp.ne.s32.totalorder %s170, %s171
      %p183 = scmp.eq.s32.totalorder %s37, 1
      %p184 = por %p182, %p183
      %p186 = scmp.ne.s32.totalorder %s171, %s185
      %p187 = scmp.eq.s32.totalorder %s37, 0
      %p188 = por %p186, %p187
      %s190 = sadd.s32 %s189, 1
      %p193 = scmp.eq.s32.totalorder %s31, 1
      %p194 = scmp.ne.s32.totalorder %s189, %s191
      %p195 = scmp.eq.s32.totalorder %s31, 0
      %p196 = por %p194, %p195
      %p197 = scmp.ne.s32.totalorder %s189, %s191
      %p198 = scmp.eq.s32.totalorder %s36, 1
      %p199 = por %p197, %p198
      %p200 = scmp.ne.s32.totalorder %s191, %s192
      %p201 = scmp.eq.s32.totalorder %s36, 0
      %p202 = por %p200, %p201
      %p203 = scmp.ne.s32.totalorder %s191, %s192
      %p204 = scmp.eq.s32.totalorder %s37, 1
      %p205 = por %p203, %p204
      %p207 = scmp.ne.s32.totalorder %s192, %s206
      %p208 = scmp.eq.s32.totalorder %s37, 0
      %p209 = por %p207, %p208
      %s211 = sadd.s32 %s210, 1
      %p214 = scmp.eq.s32.totalorder %s31, 1
      %p215 = scmp.ne.s32.totalorder %s210, %s212
      %p216 = scmp.eq.s32.totalorder %s31, 0
      %p217 = por %p215, %p216
      %p218 = scmp.ne.s32.totalorder %s210, %s212
      %p219 = scmp.eq.s32.totalorder %s36, 1
      %p220 = por %p218, %p219
      %p221 = scmp.ne.s32.totalorder %s212, %s213
      %p222 = scmp.eq.s32.totalorder %s36, 0
      %p223 = por %p221, %p222
      %p224 = scmp.ne.s32.totalorder %s212, %s213
      %p225 = scmp.eq.s32.totalorder %s37, 1
      %p226 = por %p224, %p225
      %p228 = scmp.ne.s32.totalorder %s213, %s227
      %p229 = scmp.eq.s32.totalorder %s37, 0
      %p230 = por %p228, %p229
      %s232 = sadd.s32 %s231, 1
      %p235 = scmp.eq.s32.totalorder %s31, 1
      %p236 = scmp.ne.s32.totalorder %s231, %s233
      %p237 = scmp.eq.s32.totalorder %s31, 0
      %p238 = por %p236, %p237
      %p239 = scmp.ne.s32.totalorder %s231, %s233
      %p240 = scmp.eq.s32.totalorder %s36, 1
      %p241 = por %p239, %p240
      %p242 = scmp.ne.s32.totalorder %s233, %s234
      %p243 = scmp.eq.s32.totalorder %s36, 0
      %p244 = por %p242, %p243
      %p245 = scmp.ne.s32.totalorder %s233, %s234
      %p246 = scmp.eq.s32.totalorder %s37, 1
      %p247 = por %p245, %p246
      %p249 = scmp.ne.s32.totalorder %s234, %s248
      %p250 = scmp.eq.s32.totalorder %s37, 0
      %p251 = por %p249, %p250
      %s253 = sadd.s32 %s252, 1
      %p256 = scmp.eq.s32.totalorder %s31, 1
      %p257 = scmp.ne.s32.totalorder %s252, %s254
      %p258 = scmp.eq.s32.totalorder %s31, 0
      %p259 = por %p257, %p258
      %p260 = scmp.ne.s32.totalorder %s252, %s254
      %p261 = scmp.eq.s32.totalorder %s36, 1
      %p262 = por %p260, %p261
      %p263 = scmp.ne.s32.totalorder %s254, %s255
      %p264 = scmp.eq.s32.totalorder %s36, 0
      %p265 = por %p263, %p264
      %p266 = scmp.ne.s32.totalorder %s254, %s255
      %p267 = scmp.eq.s32.totalorder %s37, 1
      %p268 = por %p266, %p267
      %p270 = scmp.ne.s32.totalorder %s255, %s269
      %p271 = scmp.eq.s32.totalorder %s37, 0
      %p272 = por %p270, %p271
      %s274 = sadd.s32 %s273, 1
      %p277 = scmp.eq.s32.totalorder %s31, 1
      %p278 = scmp.ne.s32.totalorder %s273, %s275
      %p279 = scmp.eq.s32.totalorder %s31, 0
      %p280 = por %p278, %p279
      %p281 = scmp.ne.s32.totalorder %s273, %s275
      %p282 = scmp.eq.s32.totalorder %s36, 1
      %p283 = por %p281, %p282
      %p284 = scmp.ne.s32.totalorder %s275, %s276
      %p285 = scmp.eq.s32.totalorder %s36, 0
      %p286 = por %p284, %p285
      %p287 = scmp.ne.s32.totalorder %s275, %s276
      %p288 = scmp.eq.s32.totalorder %s37, 1
      %p289 = por %p287, %p288
      %p291 = scmp.ne.s32.totalorder %s276, %s290
      %p292 = scmp.eq.s32.totalorder %s37, 0
      %p293 = por %p291, %p292
      %s295 = sadd.s32 %s294, 1
      %p298 = scmp.eq.s32.totalorder %s31, 1
      %p299 = scmp.ne.s32.totalorder %s294, %s296
      %p300 = scmp.eq.s32.totalorder %s31, 0
      %p301 = por %p299, %p300
      %p302 = scmp.ne.s32.totalorder %s294, %s296
      %p303 = scmp.eq.s32.totalorder %s36, 1
      %p304 = por %p302, %p303
      %p305 = scmp.ne.s32.totalorder %s296, %s297
      %p306 = scmp.eq.s32.totalorder %s36, 0
      %p307 = por %p305, %p306
      %p308 = scmp.ne.s32.totalorder %s296, %s297
      %p309 = scmp.eq.s32.totalorder %s37, 1
      %p310 = por %p308, %p309
      %p312 = scmp.ne.s32.totalorder %s297, %s311
      %p313 = scmp.eq.s32.totalorder %s37, 0
      %p314 = por %p312, %p313
      %s316 = sadd.s32 %s315, 1
      %p319 = scmp.eq.s32.totalorder %s31, 1
      %p320 = scmp.ne.s32.totalorder %s315, %s317
      %p321 = scmp.eq.s32.totalorder %s31, 0
      %p322 = por %p320, %p321
      %p323 = scmp.ne.s32.totalorder %s315, %s317
      %p324 = scmp.eq.s32.totalorder %s36, 1
      %p325 = por %p323, %p324
      %p326 = scmp.ne.s32.totalorder %s317, %s318
      %p327 = scmp.eq.s32.totalorder %s36, 0
      %p328 = por %p326, %p327
      %p329 = scmp.ne.s32.totalorder %s317, %s318
      %p330 = scmp.eq.s32.totalorder %s37, 1
      %p331 = por %p329, %p330
      %p333 = scmp.ne.s32.totalorder %s318, %s332
      %p334 = scmp.eq.s32.totalorder %s37, 0
      %p335 = por %p333, %p334
      %s337 = sadd.s32 %s336, 1
      %p340 = scmp.eq.s32.totalorder %s31, 1
      %p341 = scmp.ne.s32.totalorder %s336, %s338
      %p342 = scmp.eq.s32.totalorder %s31, 0
      %p343 = por %p341, %p342
      %p344 = scmp.ne.s32.totalorder %s336, %s338
      %p345 = scmp.eq.s32.totalorder %s36, 1
      %p346 = por %p344, %p345
      %p347 = scmp.ne.s32.totalorder %s338, %s339
      %p348 = scmp.eq.s32.totalorder %s36, 0
      %p349 = por %p347, %p348
      %p350 = scmp.ne.s32.totalorder %s338, %s339
      %p351 = scmp.eq.s32.totalorder %s37, 1
      %p352 = por %p350, %p351
      %p354 = scmp.ne.s32.totalorder %s339, %s353
      %p355 = scmp.eq.s32.totalorder %s37, 0
      %p356 = por %p354, %p355
      %s358 = sadd.s32 %s357, 1
      %p361 = scmp.eq.s32.totalorder %s31, 1
      %p362 = scmp.ne.s32.totalorder %s357, %s359
      %p363 = scmp.eq.s32.totalorder %s31, 0
      %p364 = por %p362, %p363
      %p365 = scmp.ne.s32.totalorder %s357, %s359
      %p366 = scmp.eq.s32.totalorder %s36, 1
      %p367 = por %p365, %p366
      %p368 = scmp.ne.s32.totalorder %s359, %s360
      %p369 = scmp.eq.s32.totalorder %s36, 0
      %p370 = por %p368, %p369
      %p371 = scmp.ne.s32.totalorder %s359, %s360
      %p372 = scmp.eq.s32.totalorder %s37, 1
      %p373 = por %p371, %p372
      %p375 = scmp.ne.s32.totalorder %s360, %s374
      %p376 = scmp.eq.s32.totalorder %s37, 0
      %p377 = por %p375, %p376
      %s379 = sadd.s32 %s378, 1
      %p382 = scmp.eq.s32.totalorder %s31, 1
      %p383 = scmp.ne.s32.totalorder %s378, %s380
      %p384 = scmp.eq.s32.totalorder %s31, 0
      %p385 = por %p383, %p384
      %p386 = scmp.ne.s32.totalorder %s378, %s380
      %p387 = scmp.eq.s32.totalorder %s36, 1
      %p388 = por %p386, %p387
      %p389 = scmp.ne.s32.totalorder %s380, %s381
      %p390 = scmp.eq.s32.totalorder %s36, 0
      %p391 = por %p389, %p390
      %p392 = scmp.ne.s32.totalorder %s380, %s381
      %p393 = scmp.eq.s32.totalorder %s37, 1
      %p394 = por %p392, %p393
      %p396 = scmp.ne.s32.totalorder %s381, %s395
      %p397 = scmp.eq.s32.totalorder %s37, 0
      %p398 = por %p396, %p397
      %s399 = ssub.s32 %s38, %s50
      %s400 = ssub.s32 %s39, %s46
      %s401 = sor.u32 %s399, %s400
      %p402 = scmp.eq.s32.totalorder %s401, 0
      %s404 = sadd.s32 %s403, 1
      %s405 = scalar_select %p402, %s403, %s404
      %p408 = pneg %p402
      %p409 = scmp.eq.s32.totalorder %s31, 1
      %p410 = por %p408, %p409
      %p411 = scmp.ne.s32.totalorder %s403, %s406
      %p412 = scmp.eq.s32.totalorder %s31, 0
      %p413 = por %p411, %p412
      %p414 = scmp.ne.s32.totalorder %s403, %s406
      %p415 = scmp.eq.s32.totalorder %s36, 1
      %p416 = por %p414, %p415
      %p417 = scmp.ne.s32.totalorder %s406, %s407
      %p418 = scmp.eq.s32.totalorder %s36, 0
      %p419 = por %p417, %p418
      %p420 = scmp.ne.s32.totalorder %s406, %s407
      %p421 = scmp.eq.s32.totalorder %s37, 1
      %p422 = por %p420, %p421
      %p424 = scmp.ne.s32.totalorder %s407, %s423
      %p425 = scmp.eq.s32.totalorder %s37, 0
      %p426 = por %p424, %p425
      %p427 = scmp.le.s32.totalorder 1, %s31
      %p428 = scmp.lt.s32.totalorder %s31, 3
      %p429 = pnand %p427, %p428
      %p430 = pneg %p429
      // Predicated region
      $region9: #{tpu_custom_call.1} parent=5 // pred_check
        _
      $region10: #{tpu_custom_call.1} parent=5 // pred_check_branch
        %432 = sbr.rel (%p429) target = $region12
      $region11: #{tpu_custom_call.1} parent=5 // pred_region
        %s433 = ssub.s32 %s31, 1
        // Predicated region
        $region13: #{tpu_custom_call.1} parent=11 // pred_check
          %p434 = pneg %p118
        $region14: #{tpu_custom_call.1} parent=11 // pred_check_branch
          %436 = sbr.rel (%p434) target = $region16
        $region15: #{tpu_custom_call.1} parent=11 // pred_region
          _
        $region16: #{tpu_custom_call.1} parent=11 // pred_fallthru
          _
        // Predicated region
        $region17: #{tpu_custom_call.1} parent=11 // pred_check
          %p437 = pneg %p139
        $region18: #{tpu_custom_call.1} parent=11 // pred_check_branch
          %439 = sbr.rel (%p437) target = $region20
        $region19: #{tpu_custom_call.1} parent=11 // pred_region
          _
        $region20: #{tpu_custom_call.1} parent=11 // pred_fallthru
          _
        // Predicated region
        $region21: #{tpu_custom_call.1} parent=11 // pred_check
          %p440 = pneg %p160
        $region22: #{tpu_custom_call.1} parent=11 // pred_check_branch
          %442 = sbr.rel (%p440) target = $region24
        $region23: #{tpu_custom_call.1} parent=11 // pred_region
          _
        $region24: #{tpu_custom_call.1} parent=11 // pred_fallthru
          _
        // Predicated region
        $region25: #{tpu_custom_call.1} parent=11 // pred_check
          %p443 = pneg %p181
        $region26: #{tpu_custom_call.1} parent=11 // pred_check_branch
          %445 = sbr.rel (%p443) target = $region28
        $region27: #{tpu_custom_call.1} parent=11 // pred_region
          _
        $region28: #{tpu_custom_call.1} parent=11 // pred_fallthru
          _
        // Predicated region
        $region29: #{tpu_custom_call.1} parent=11 // pred_check
          %p446 = pneg %p202
        $region30: #{tpu_custom_call.1} parent=11 // pred_check_branch
          %448 = sbr.rel (%p446) target = $region32
        $region31: #{tpu_custom_call.1} parent=11 // pred_region
          _
        $region32: #{tpu_custom_call.1} parent=11 // pred_fallthru
          _
        // Predicated region
        $region33: #{tpu_custom_call.1} parent=11 // pred_check
          %p449 = pneg %p223
        $region34: #{tpu_custom_call.1} parent=11 // pred_check_branch
          %451 = sbr.rel (%p449) target = $region36
        $region35: #{tpu_custom_call.1} parent=11 // pred_region
          _
        $region36: #{tpu_custom_call.1} parent=11 // pred_fallthru
          _
        // Predicated region
        $region37: #{tpu_custom_call.1} parent=11 // pred_check
          %p452 = pneg %p244
        $region38: #{tpu_custom_call.1} parent=11 // pred_check_branch
          %454 = sbr.rel (%p452) target = $region40
        $region39: #{tpu_custom_call.1} parent=11 // pred_region
          %s456 = ssub.s32 512, 512
          %457 = vsyncadd [#allocation6], %s456
          %s458 = sshll.u32 [#allocation7], 4
          %s459 = int_to_ptr.vmem [resolvable:$true] %s458
          %464 = dma.hbm_to_vmem [thread:$0]  %s8, 512, %s459, [#allocation6], 128, 128, 8
        $region40: #{tpu_custom_call.1} parent=11 // pred_fallthru
          _
        // Predicated region
        $region41: #{tpu_custom_call.1} parent=11 // pred_check
          %p465 = pneg %p265
        $region42: #{tpu_custom_call.1} parent=11 // pred_check_branch
          %467 = sbr.rel (%p465) target = $region44
        $region43: #{tpu_custom_call.1} parent=11 // pred_region
          _
        $region44: #{tpu_custom_call.1} parent=11 // pred_fallthru
          _
        // Predicated region
        $region45: #{tpu_custom_call.1} parent=11 // pred_check
          %p468 = pneg %p286
        $region46: #{tpu_custom_call.1} parent=11 // pred_check_branch
          %470 = sbr.rel (%p468) target = $region48
        $region47: #{tpu_custom_call.1} parent=11 // pred_region
          _
        $region48: #{tpu_custom_call.1} parent=11 // pred_fallthru
          _
        // Predicated region
        $region49: #{tpu_custom_call.1} parent=11 // pred_check
          %p471 = pneg %p307
        $region50: #{tpu_custom_call.1} parent=11 // pred_check_branch
          %473 = sbr.rel (%p471) target = $region52
        $region51: #{tpu_custom_call.1} parent=11 // pred_region
          _
        $region52: #{tpu_custom_call.1} parent=11 // pred_fallthru
          _
        // Predicated region
        $region53: #{tpu_custom_call.1} parent=11 // pred_check
          %p474 = pneg %p328
        $region54: #{tpu_custom_call.1} parent=11 // pred_check_branch
          %476 = sbr.rel (%p474) target = $region56
        $region55: #{tpu_custom_call.1} parent=11 // pred_region
          _
        $region56: #{tpu_custom_call.1} parent=11 // pred_fallthru
          _
        // Predicated region
        $region57: #{tpu_custom_call.1} parent=11 // pred_check
          %p477 = pneg %p349
        $region58: #{tpu_custom_call.1} parent=11 // pred_check_branch
          %479 = sbr.rel (%p477) target = $region60
        $region59: #{tpu_custom_call.1} parent=11 // pred_region
          _
        $region60: #{tpu_custom_call.1} parent=11 // pred_fallthru
          _
        // Predicated region
        $region61: #{tpu_custom_call.1} parent=11 // pred_check
          %p480 = pneg %p370
        $region62: #{tpu_custom_call.1} parent=11 // pred_check_branch
          %482 = sbr.rel (%p480) target = $region64
        $region63: #{tpu_custom_call.1} parent=11 // pred_region
          _
        $region64: #{tpu_custom_call.1} parent=11 // pred_fallthru
          _
        // Predicated region
        $region65: #{tpu_custom_call.1} parent=11 // pred_check
          %p483 = pneg %p391
        $region66: #{tpu_custom_call.1} parent=11 // pred_check_branch
          %485 = sbr.rel (%p483) target = $region68
        $region67: #{tpu_custom_call.1} parent=11 // pred_region
          _
        $region68: #{tpu_custom_call.1} parent=11 // pred_fallthru
          _
      $region12: #{tpu_custom_call.1} parent=5 // pred_fallthru
        _
      %p486 = scmp.lt.s32.totalorder %s31, 2
      // Predicated region
      $region69: #{tpu_custom_call.1} parent=5 // pred_check
        %p487 = pneg %p486
      $region70: #{tpu_custom_call.1} parent=5 // pred_check_branch
        %489 = sbr.rel (%p487) target = $region72
      $region71: #{tpu_custom_call.1} parent=5 // pred_region
        // Predicated region
        $region73: #{tpu_custom_call.1} parent=71 // pred_check
          %p490 = pneg %p63
        $region74: #{tpu_custom_call.1} parent=71 // pred_check_branch
          %492 = sbr.rel (%p490) target = $region76
        $region75: #{tpu_custom_call.1} parent=71 // pred_region
          %s493 = sand.u32 %s53, 1
          %s494 = scalar_lea.sflag [#allocation3], %s493
          %s495 = sand.u32 %s53, 1
          %s496 = smul.addr %s495, 8
          %s497 = scalar_lea.vmem [#allocation2], %s496
          %s499 = ssub.s32 128, 128
          %500 = vsyncadd %s494, %s499
          %s501 = smul.addr %s38, 128
          %s502 = scalar_lea.hbm %s0, %s501
          %s504 = sshll.u32 %s497, 4
          %s505 = int_to_ptr.vmem [resolvable:$true] %s504
          %507 = dma.hbm_to_vmem [thread:$0]  %s502, 128, %s505, %s494
        $region76: #{tpu_custom_call.1} parent=71 // pred_fallthru
          _
        // Predicated region
        $region77: #{tpu_custom_call.1} parent=71 // pred_check
          %p508 = pneg %p91
        $region78: #{tpu_custom_call.1} parent=71 // pred_check_branch
          %510 = sbr.rel (%p508) target = $region80
        $region79: #{tpu_custom_call.1} parent=71 // pred_region
          %s511 = sand.u32 %s31, 1
          %s512 = scalar_lea.sflag [#allocation6], %s511
          %s513 = sand.u32 %s81, 1
          %s514 = smul.addr %s513, 8
          %s515 = scalar_lea.vmem [#allocation5], %s514
          %s517 = ssub.s32 128, 128
          %518 = vsyncadd %s512, %s517
          %s519 = sadd.s32 %s39, %s38
          %s520 = smul.addr %s519, 128
          %s521 = scalar_lea.hbm %s1, %s520
          %s523 = sshll.u32 %s515, 4
          %s524 = int_to_ptr.vmem [resolvable:$true] %s523
          %526 = dma.hbm_to_vmem [thread:$0]  %s521, 128, %s524, %s512
        $region80: #{tpu_custom_call.1} parent=71 // pred_fallthru
          _
      $region72: #{tpu_custom_call.1} parent=5 // pred_fallthru
        _
      %p527 = scmp.le.s32.totalorder 1, %s31
      %p528 = scmp.lt.s32.totalorder %s31, 3
      %p529 = pnand %p527, %p528
      %p530 = pneg %p529
      // Predicated region
      $region81: #{tpu_custom_call.1} parent=5 // pred_check
        _
      $region82: #{tpu_custom_call.1} parent=5 // pred_check_branch
        %532 = sbr.rel (%p529) target = $region84
      $region83: #{tpu_custom_call.1} parent=5 // pred_region
        %s533 = ssub.s32 %s31, 1
        %s534 = sand.u32 %s56, 1
        %s535 = scalar_lea.sflag [#allocation3], %s534
        %s536 = sand.u32 %s56, 1
        %s537 = smul.addr %s536, 8
        %s538 = scalar_lea.vmem [#allocation2], %s537
        // Predicated region
        $region85: #{tpu_custom_call.1} parent=83 // pred_check
          %p539 = pneg %p69
        $region86: #{tpu_custom_call.1} parent=83 // pred_check_branch
          %541 = sbr.rel (%p539) target = $region88
        $region87: #{tpu_custom_call.1} parent=83 // pred_region
          %542 = dma.done %s535, 128
        $region88: #{tpu_custom_call.1} parent=83 // pred_fallthru
          _
        %s543 = sand.u32 %s36, 1
        %s544 = scalar_lea.sflag [#allocation6], %s543
        %s545 = sand.u32 %s84, 1
        %s546 = smul.addr %s545, 8
        %s547 = scalar_lea.vmem [#allocation5], %s546
        // Predicated region
        $region89: #{tpu_custom_call.1} parent=83 // pred_check
          %p548 = pneg %p97
        $region90: #{tpu_custom_call.1} parent=83 // pred_check_branch
          %550 = sbr.rel (%p548) target = $region92
        $region91: #{tpu_custom_call.1} parent=83 // pred_region
          %551 = dma.done %s544, 128
        $region92: #{tpu_custom_call.1} parent=83 // pred_fallthru
          _
        // Predicated region
        $region93: #{tpu_custom_call.1} parent=83 // pred_check
          %p552 = pneg %p244
        $region94: #{tpu_custom_call.1} parent=83 // pred_check_branch
          %554 = sbr.rel (%p552) target = $region96
        $region95: #{tpu_custom_call.1} parent=83 // pred_region
          %555 = dma.done [#allocation6], 512
        $region96: #{tpu_custom_call.1} parent=83 // pred_fallthru
          _
        %s556 = sand.u32 %s56, 1
        %s557 = scalar_lea.sflag [#allocation3], %s556
        %s558 = sand.u32 %s56, 1
        %s559 = smul.addr %s558, 8
        %s560 = scalar_lea.vmem [#allocation2], %s559
        %p561 = pneg %p69
        %p562 = pneg %p66
        %s563 = sand.u32 %s36, 1
        %s564 = scalar_lea.sflag [#allocation6], %s563
        %s565 = sand.u32 %s84, 1
        %s566 = smul.addr %s565, 8
        %s567 = scalar_lea.vmem [#allocation5], %s566
        %p568 = pneg %p97
        %p569 = pneg %p94
        %p570 = pneg %p118
        %p571 = pneg %p115
        %p572 = pneg %p139
        %p573 = pneg %p136
        %p574 = pneg %p160
        %p575 = pneg %p157
        %p576 = pneg %p181
        %p577 = pneg %p178
        %p578 = pneg %p202
        %p579 = pneg %p199
        %p580 = pneg %p223
        %p581 = pneg %p220
        %p582 = pneg %p244
        %p583 = pneg %p241
        %p584 = pneg %p265
        %p585 = pneg %p262
        %p586 = pneg %p286
        %p587 = pneg %p283
        %p588 = pneg %p307
        %p589 = pneg %p304
        %p590 = pneg %p328
        %p591 = pneg %p325
        %p592 = pneg %p349
        %p593 = pneg %p346
        %p594 = pneg %p370
        %p595 = pneg %p367
        %p596 = pneg %p391
        %p597 = pneg %p388
        %p598 = pneg %p419
        %p599 = pneg %p416
        %s600 = sand.u32 %s406, 1
        %s601 = scalar_lea.sflag [#allocation4], %s600
        %s602 = sand.u32 %s406, 1
        %s603 = smul.addr %s602, 8
        %s604 = scalar_lea.vmem [#allocation8], %s603
        %v605 = vld [vmem:[%s538] sm:$0xff]
        %v606 = vld [vmem:[%s547] sm:$0xff]
        %v607 = vld [vmem:[%s2] sm:$0xff]
        %v608 = vld [vmem:[%s2 + $0x8] sm:$0xff]
        %v609 = vld [vmem:[%s2 + $0x10] sm:$0xff]
        %v610 = vld [vmem:[%s2 + $0x18] sm:$0xff]
        %v611 = vld [vmem:[%s3] sm:$0x1]
        %v613 = vlaneseq
        %v614 = vshrl.u32 %v613, 7
        %v615 = vsub.s32 0, %v614
        %v616 = vrot.slane %v611, %v615
        %vm618 = vcmask 261120
        %v620 = vsel %vm618, %v606, 0
        %622 = vmatprep.subr.mxu0 0.0
        %623 = vmatpush1.msra.mxu0 0.0
        %624 = vmatprep.subr.mxu0 0.0
        %625 = vmatpush1.msra.mxu0 0.0
        %626 = vmatprep.subr.mxu0 0.0
        %627 = vmatpush1.msra.mxu0 0.0
        %628 = vmatprep.subr.mxu0 0.0
        %629 = vmatpush1.msra.mxu0 0.0
        %630 = vmatprep.subr.mxu0 0.0
        %631 = vmatpush1.msra.mxu0 0.0
        %632 = vmatprep.subr.mxu0 0.0
        %633 = vmatpush1.msra.mxu0 0.0
        %634 = vmatprep.subr.mxu0 0.0
        %635 = vmatpush1.msra.mxu0 0.0
        %636 = vmatprep.subr.mxu0 0.0
        %637 = vmatpush1.msra.mxu0 0.0
        %638 = vmatprep.subr.mxu0 0.0
        %639 = vmatpush1.msra.mxu0 0.0
        %640 = vmatprep.subr.mxu0 0.0
        %641 = vmatpush1.msra.mxu0 0.0
        %642 = vmatprep.subr.mxu0 0.0
        %643 = vmatpush1.msra.mxu0 0.0
        %644 = vmatprep.subr.mxu0 0.0
        %645 = vmatpush1.msra.mxu0 0.0
        %646 = vmatprep.subr.mxu0 0.0
        %647 = vmatpush1.msra.mxu0 %v610
        %648 = vmatprep.subr.mxu0 0.0
        %649 = vmatpush1.msra.mxu0 %v609
        %650 = vmatprep.subr.mxu0 0.0
        %651 = vmatpush1.msra.mxu0 %v608
        %652 = vmatprep.subr.mxu0 0.0
        %653 = vmatpush1.msra.mxu0 %v607
        %654 = vmatprep.subr.mxu0 0.0
        %655 = vmatpush2.msra.mxu0 0.0
        %656 = vmatprep.subr.mxu0 0.0
        %657 = vmatpush2.msra.mxu0 0.0
        %658 = vmatprep.subr.mxu0 0.0
        %659 = vmatpush2.msra.mxu0 0.0
        %660 = vmatprep.subr.mxu0 0.0
        %661 = vmatpush2.msra.mxu0 0.0
        %662 = vmatprep.subr.mxu0 0.0
        %663 = vmatpush2.msra.mxu0 0.0
        %664 = vmatprep.subr.mxu0 0.0
        %665 = vmatpush2.msra.mxu0 0.0
        %666 = vmatprep.subr.mxu0 0.0
        %667 = vmatpush2.msra.mxu0 0.0
        %668 = vmatprep.subr.mxu0 0.0
        %669 = vmatpush2.msra.mxu0 0.0
        %670 = vmatprep.subr.mxu0 0.0
        %671 = vmatpush2.msra.mxu0 0.0
        %672 = vmatprep.subr.mxu0 0.0
        %673 = vmatpush2.msra.mxu0 0.0
        %674 = vmatprep.subr.mxu0 0.0
        %675 = vmatpush2.msra.mxu0 0.0
        %676 = vmatprep.subr.mxu0 0.0
        %677 = vmatpush2.msra.mxu0 0.0
        %678 = vmatprep.subr.mxu0 0.0
        %679 = vmatpush2.msra.mxu0 0.0
        %680 = vmatprep.subr.mxu0 0.0
        %681 = vmatpush2.msra.mxu0 0.0
        %682 = vmatprep.subr.mxu0 0.0
        %683 = vmatpush2.msra.mxu0 0.0
        %684 = vmatprep.subr.mxu0 0.0
        %685 = vmatpush2.msra.mxu0 0.0
        %686 = vmatprep.mubr.f32.mxu0 0.0
        %687 = vmatmul.mubr.f32.gmra.mxu0 %v620
        %v688 = vpop.f32.mrf.mxu0
        %v689 = vadd.f32 %v616, %v688
        %v690 = vpop.f32.mrf.mxu0
        %691 = vdwg.mxu0
        %693 = vrot.lane.b32.xlu0 %v689, 120
        %v694 = vpop.permute.xlu0 %693
        %695 = vrot.lane.b32.xlu0 %v689, 112
        %v696 = vpop.permute.xlu0 %695
        %697 = vrot.lane.b32.xlu0 %v689, 104
        %v698 = vpop.permute.xlu0 %697
        %v699 = vld [vmem:[%s4] sm:$0xff]
        %v700 = vld [vmem:[%s4 + $0x8] sm:$0xff]
        %v701 = vld [vmem:[%s4 + $0x10] sm:$0xff]
        %v702 = vld [vmem:[%s4 + $0x18] sm:$0xff]
        %v703 = vld [vmem:[%s5] sm:$0x1]
        %v705 = vlaneseq
        %v706 = vshrl.u32 %v705, 7
        %v707 = vsub.s32 0, %v706
        %v708 = vrot.slane %v703, %v707
        %v711 = vsel %vm618, %v605, 0
        %713 = vmatprep.subr.mxu0 0.0
        %714 = vmatpush1.msra.mxu0 0.0
        %715 = vmatprep.subr.mxu0 0.0
        %716 = vmatpush1.msra.mxu0 0.0
        %717 = vmatprep.subr.mxu0 0.0
        %718 = vmatpush1.msra.mxu0 0.0
        %719 = vmatprep.subr.mxu0 0.0
        %720 = vmatpush1.msra.mxu0 0.0
        %721 = vmatprep.subr.mxu0 0.0
        %722 = vmatpush1.msra.mxu0 0.0
        %723 = vmatprep.subr.mxu0 0.0
        %724 = vmatpush1.msra.mxu0 0.0
        %725 = vmatprep.subr.mxu0 0.0
        %726 = vmatpush1.msra.mxu0 0.0
        %727 = vmatprep.subr.mxu0 0.0
        %728 = vmatpush1.msra.mxu0 0.0
        %729 = vmatprep.subr.mxu0 0.0
        %730 = vmatpush1.msra.mxu0 0.0
        %731 = vmatprep.subr.mxu0 0.0
        %732 = vmatpush1.msra.mxu0 0.0
        %733 = vmatprep.subr.mxu0 0.0
        %734 = vmatpush1.msra.mxu0 0.0
        %735 = vmatprep.subr.mxu0 0.0
        %736 = vmatpush1.msra.mxu0 0.0
        %737 = vmatprep.subr.mxu0 0.0
        %738 = vmatpush1.msra.mxu0 %v702
        %739 = vmatprep.subr.mxu0 0.0
        %740 = vmatpush1.msra.mxu0 %v701
        %741 = vmatprep.subr.mxu0 0.0
        %742 = vmatpush1.msra.mxu0 %v700
        %743 = vmatprep.subr.mxu0 0.0
        %744 = vmatpush1.msra.mxu0 %v699
        %745 = vmatprep.subr.mxu0 0.0
        %746 = vmatpush2.msra.mxu0 0.0
        %747 = vmatprep.subr.mxu0 0.0
        %748 = vmatpush2.msra.mxu0 0.0
        %749 = vmatprep.subr.mxu0 0.0
        %750 = vmatpush2.msra.mxu0 0.0
        %751 = vmatprep.subr.mxu0 0.0
        %752 = vmatpush2.msra.mxu0 0.0
        %753 = vmatprep.subr.mxu0 0.0
        %754 = vmatpush2.msra.mxu0 0.0
        %755 = vmatprep.subr.mxu0 0.0
        %756 = vmatpush2.msra.mxu0 0.0
        %757 = vmatprep.subr.mxu0 0.0
        %758 = vmatpush2.msra.mxu0 0.0
        %759 = vmatprep.subr.mxu0 0.0
        %760 = vmatpush2.msra.mxu0 0.0
        %761 = vmatprep.subr.mxu0 0.0
        %762 = vmatpush2.msra.mxu0 0.0
        %763 = vmatprep.subr.mxu0 0.0
        %764 = vmatpush2.msra.mxu0 0.0
        %765 = vmatprep.subr.mxu0 0.0
        %766 = vmatpush2.msra.mxu0 0.0
        %767 = vmatprep.subr.mxu0 0.0
        %768 = vmatpush2.msra.mxu0 0.0
        %769 = vmatprep.subr.mxu0 0.0
        %770 = vmatpush2.msra.mxu0 0.0
        %771 = vmatprep.subr.mxu0 0.0
        %772 = vmatpush2.msra.mxu0 0.0
        %773 = vmatprep.subr.mxu0 0.0
        %774 = vmatpush2.msra.mxu0 0.0
        %775 = vmatprep.subr.mxu0 0.0
        %776 = vmatpush2.msra.mxu0 0.0
        %777 = vmatprep.mubr.f32.mxu0 0.0
        %778 = vmatmul.mubr.f32.gmra.mxu0 %v711
        %v779 = vpop.f32.mrf.mxu0
        %v780 = vadd.f32 %v708, %v779
        %v781 = vpop.f32.mrf.mxu0
        %782 = vdwg.mxu0
        %784 = vrot.lane.b32.xlu0 %v780, 120
        %v785 = vpop.permute.xlu0 %784
        %786 = vrot.lane.b32.xlu0 %v780, 112
        %v787 = vpop.permute.xlu0 %786
        %788 = vrot.lane.b32.xlu0 %v780, 104
        %v789 = vpop.permute.xlu0 %788
        %vm790 = vcmask 64512
        %v791 = vsel %vm790, %v689, 0
        %v793 = vsel %vm790, %v780, 0
        %795 = vmatprep.subr.mxu0 0.0
        %796 = vmatpush1.xpose.msra.mxu0 0.0
        %797 = vmatprep.subr.mxu0 0.0
        %798 = vmatpush1.xpose.msra.mxu0 0.0
        %799 = vmatprep.subr.mxu0 0.0
        %800 = vmatpush1.xpose.msra.mxu0 0.0
        %801 = vmatprep.subr.mxu0 0.0
        %802 = vmatpush1.xpose.msra.mxu0 0.0
        %803 = vmatprep.subr.mxu0 0.0
        %804 = vmatpush1.xpose.msra.mxu0 0.0
        %805 = vmatprep.subr.mxu0 0.0
        %806 = vmatpush1.xpose.msra.mxu0 0.0
        %807 = vmatprep.subr.mxu0 0.0
        %808 = vmatpush1.xpose.msra.mxu0 0.0
        %809 = vmatprep.subr.mxu0 0.0
        %810 = vmatpush1.xpose.msra.mxu0 0.0
        %811 = vmatprep.subr.mxu0 0.0
        %812 = vmatpush1.xpose.msra.mxu0 0.0
        %813 = vmatprep.subr.mxu0 0.0
        %814 = vmatpush1.xpose.msra.mxu0 0.0
        %815 = vmatprep.subr.mxu0 0.0
        %816 = vmatpush1.xpose.msra.mxu0 0.0
        %817 = vmatprep.subr.mxu0 0.0
        %818 = vmatpush1.xpose.msra.mxu0 0.0
        %819 = vmatprep.subr.mxu0 0.0
        %820 = vmatpush1.xpose.msra.mxu0 0.0
        %821 = vmatprep.subr.mxu0 0.0
        %822 = vmatpush1.xpose.msra.mxu0 0.0
        %823 = vmatprep.subr.mxu0 0.0
        %824 = vmatpush1.xpose.msra.mxu0 0.0
        %825 = vmatprep.subr.mxu0 0.0
        %826 = vmatpush1.xpose.msra.mxu0 %v793
        %827 = vmatprep.subr.mxu0 0.0
        %828 = vmatpush2.xpose.msra.mxu0 0.0
        %829 = vmatprep.subr.mxu0 0.0
        %830 = vmatpush2.xpose.msra.mxu0 0.0
        %831 = vmatprep.subr.mxu0 0.0
        %832 = vmatpush2.xpose.msra.mxu0 0.0
        %833 = vmatprep.subr.mxu0 0.0
        %834 = vmatpush2.xpose.msra.mxu0 0.0
        %835 = vmatprep.subr.mxu0 0.0
        %836 = vmatpush2.xpose.msra.mxu0 0.0
        %837 = vmatprep.subr.mxu0 0.0
        %838 = vmatpush2.xpose.msra.mxu0 0.0
        %839 = vmatprep.subr.mxu0 0.0
        %840 = vmatpush2.xpose.msra.mxu0 0.0
        %841 = vmatprep.subr.mxu0 0.0
        %842 = vmatpush2.xpose.msra.mxu0 0.0
        %843 = vmatprep.subr.mxu0 0.0
        %844 = vmatpush2.xpose.msra.mxu0 0.0
        %845 = vmatprep.subr.mxu0 0.0
        %846 = vmatpush2.xpose.msra.mxu0 0.0
        %847 = vmatprep.subr.mxu0 0.0
        %848 = vmatpush2.xpose.msra.mxu0 0.0
        %849 = vmatprep.subr.mxu0 0.0
        %850 = vmatpush2.xpose.msra.mxu0 0.0
        %851 = vmatprep.subr.mxu0 0.0
        %852 = vmatpush2.xpose.msra.mxu0 0.0
        %853 = vmatprep.subr.mxu0 0.0
        %854 = vmatpush2.xpose.msra.mxu0 0.0
        %855 = vmatprep.subr.mxu0 0.0
        %856 = vmatpush2.xpose.msra.mxu0 0.0
        %857 = vmatprep.subr.mxu0 0.0
        %858 = vmatpush2.xpose.msra.mxu0 0.0
        %859 = vmatprep.mubr.f32.mxu0 0.0
        %860 = vmatmul.mubr.f32.gmra.mxu0 %v791
        %v861 = vpop.f32.mrf.mxu0
        %v862 = vadd.f32 0.0, %v861
        %v863 = vpop.f32.mrf.mxu0
        %864 = vdwg.mxu0
        %v865 = vsel %vm790, %v694, 0
        %v867 = vsel %vm790, %v785, 0
        %869 = vmatprep.subr.mxu0 0.0
        %870 = vmatpush1.xpose.msra.mxu0 0.0
        %871 = vmatprep.subr.mxu0 0.0
        %872 = vmatpush1.xpose.msra.mxu0 0.0
        %873 = vmatprep.subr.mxu0 0.0
        %874 = vmatpush1.xpose.msra.mxu0 0.0
        %875 = vmatprep.subr.mxu0 0.0
        %876 = vmatpush1.xpose.msra.mxu0 0.0
        %877 = vmatprep.subr.mxu0 0.0
        %878 = vmatpush1.xpose.msra.mxu0 0.0
        %879 = vmatprep.subr.mxu0 0.0
        %880 = vmatpush1.xpose.msra.mxu0 0.0
        %881 = vmatprep.subr.mxu0 0.0
        %882 = vmatpush1.xpose.msra.mxu0 0.0
        %883 = vmatprep.subr.mxu0 0.0
        %884 = vmatpush1.xpose.msra.mxu0 0.0
        %885 = vmatprep.subr.mxu0 0.0
        %886 = vmatpush1.xpose.msra.mxu0 0.0
        %887 = vmatprep.subr.mxu0 0.0
        %888 = vmatpush1.xpose.msra.mxu0 0.0
        %889 = vmatprep.subr.mxu0 0.0
        %890 = vmatpush1.xpose.msra.mxu0 0.0
        %891 = vmatprep.subr.mxu0 0.0
        %892 = vmatpush1.xpose.msra.mxu0 0.0
        %893 = vmatprep.subr.mxu0 0.0
        %894 = vmatpush1.xpose.msra.mxu0 0.0
        %895 = vmatprep.subr.mxu0 0.0
        %896 = vmatpush1.xpose.msra.mxu0 0.0
        %897 = vmatprep.subr.mxu0 0.0
        %898 = vmatpush1.xpose.msra.mxu0 0.0
        %899 = vmatprep.subr.mxu0 0.0
        %900 = vmatpush1.xpose.msra.mxu0 %v867
        %901 = vmatprep.subr.mxu0 0.0
        %902 = vmatpush2.xpose.msra.mxu0 0.0
        %903 = vmatprep.subr.mxu0 0.0
        %904 = vmatpush2.xpose.msra.mxu0 0.0
        %905 = vmatprep.subr.mxu0 0.0
        %906 = vmatpush2.xpose.msra.mxu0 0.0
        %907 = vmatprep.subr.mxu0 0.0
        %908 = vmatpush2.xpose.msra.mxu0 0.0
        %909 = vmatprep.subr.mxu0 0.0
        %910 = vmatpush2.xpose.msra.mxu0 0.0
        %911 = vmatprep.subr.mxu0 0.0
        %912 = vmatpush2.xpose.msra.mxu0 0.0
        %913 = vmatprep.subr.mxu0 0.0
        %914 = vmatpush2.xpose.msra.mxu0 0.0
        %915 = vmatprep.subr.mxu0 0.0
        %916 = vmatpush2.xpose.msra.mxu0 0.0
        %917 = vmatprep.subr.mxu0 0.0
        %918 = vmatpush2.xpose.msra.mxu0 0.0
        %919 = vmatprep.subr.mxu0 0.0
        %920 = vmatpush2.xpose.msra.mxu0 0.0
        %921 = vmatprep.subr.mxu0 0.0
        %922 = vmatpush2.xpose.msra.mxu0 0.0
        %923 = vmatprep.subr.mxu0 0.0
        %924 = vmatpush2.xpose.msra.mxu0 0.0
        %925 = vmatprep.subr.mxu0 0.0
        %926 = vmatpush2.xpose.msra.mxu0 0.0
        %927 = vmatprep.subr.mxu0 0.0
        %928 = vmatpush2.xpose.msra.mxu0 0.0
        %929 = vmatprep.subr.mxu0 0.0
        %930 = vmatpush2.xpose.msra.mxu0 0.0
        %931 = vmatprep.subr.mxu0 0.0
        %932 = vmatpush2.xpose.msra.mxu0 0.0
        %933 = vmatprep.mubr.f32.mxu0 0.0
        %934 = vmatmul.mubr.f32.gmra.mxu0 %v865
        %v935 = vpop.f32.mrf.mxu0
        %v936 = vadd.f32 0.0, %v935
        %v937 = vpop.f32.mrf.mxu0
        %938 = vdwg.mxu0
        %v939 = vsel %vm790, %v696, 0
        %v941 = vsel %vm790, %v787, 0
        %943 = vmatprep.subr.mxu0 0.0
        %944 = vmatpush1.xpose.msra.mxu0 0.0
        %945 = vmatprep.subr.mxu0 0.0
        %946 = vmatpush1.xpose.msra.mxu0 0.0
        %947 = vmatprep.subr.mxu0 0.0
        %948 = vmatpush1.xpose.msra.mxu0 0.0
        %949 = vmatprep.subr.mxu0 0.0
        %950 = vmatpush1.xpose.msra.mxu0 0.0
        %951 = vmatprep.subr.mxu0 0.0
        %952 = vmatpush1.xpose.msra.mxu0 0.0
        %953 = vmatprep.subr.mxu0 0.0
        %954 = vmatpush1.xpose.msra.mxu0 0.0
        %955 = vmatprep.subr.mxu0 0.0
        %956 = vmatpush1.xpose.msra.mxu0 0.0
        %957 = vmatprep.subr.mxu0 0.0
        %958 = vmatpush1.xpose.msra.mxu0 0.0
        %959 = vmatprep.subr.mxu0 0.0
        %960 = vmatpush1.xpose.msra.mxu0 0.0
        %961 = vmatprep.subr.mxu0 0.0
        %962 = vmatpush1.xpose.msra.mxu0 0.0
        %963 = vmatprep.subr.mxu0 0.0
        %964 = vmatpush1.xpose.msra.mxu0 0.0
        %965 = vmatprep.subr.mxu0 0.0
        %966 = vmatpush1.xpose.msra.mxu0 0.0
        %967 = vmatprep.subr.mxu0 0.0
        %968 = vmatpush1.xpose.msra.mxu0 0.0
        %969 = vmatprep.subr.mxu0 0.0
        %970 = vmatpush1.xpose.msra.mxu0 0.0
        %971 = vmatprep.subr.mxu0 0.0
        %972 = vmatpush1.xpose.msra.mxu0 0.0
        %973 = vmatprep.subr.mxu0 0.0
        %974 = vmatpush1.xpose.msra.mxu0 %v941
        %975 = vmatprep.subr.mxu0 0.0
        %976 = vmatpush2.xpose.msra.mxu0 0.0
        %977 = vmatprep.subr.mxu0 0.0
        %978 = vmatpush2.xpose.msra.mxu0 0.0
        %979 = vmatprep.subr.mxu0 0.0
        %980 = vmatpush2.xpose.msra.mxu0 0.0
        %981 = vmatprep.subr.mxu0 0.0
        %982 = vmatpush2.xpose.msra.mxu0 0.0
        %983 = vmatprep.subr.mxu0 0.0
        %984 = vmatpush2.xpose.msra.mxu0 0.0
        %985 = vmatprep.subr.mxu0 0.0
        %986 = vmatpush2.xpose.msra.mxu0 0.0
        %987 = vmatprep.subr.mxu0 0.0
        %988 = vmatpush2.xpose.msra.mxu0 0.0
        %989 = vmatprep.subr.mxu0 0.0
        %990 = vmatpush2.xpose.msra.mxu0 0.0
        %991 = vmatprep.subr.mxu0 0.0
        %992 = vmatpush2.xpose.msra.mxu0 0.0
        %993 = vmatprep.subr.mxu0 0.0
        %994 = vmatpush2.xpose.msra.mxu0 0.0
        %995 = vmatprep.subr.mxu0 0.0
        %996 = vmatpush2.xpose.msra.mxu0 0.0
        %997 = vmatprep.subr.mxu0 0.0
        %998 = vmatpush2.xpose.msra.mxu0 0.0
        %999 = vmatprep.subr.mxu0 0.0
        %1000 = vmatpush2.xpose.msra.mxu0 0.0
        %1001 = vmatprep.subr.mxu0 0.0
        %1002 = vmatpush2.xpose.msra.mxu0 0.0
        %1003 = vmatprep.subr.mxu0 0.0
        %1004 = vmatpush2.xpose.msra.mxu0 0.0
        %1005 = vmatprep.subr.mxu0 0.0
        %1006 = vmatpush2.xpose.msra.mxu0 0.0
        %1007 = vmatprep.mubr.f32.mxu0 0.0
        %1008 = vmatmul.mubr.f32.gmra.mxu0 %v939
        %v1009 = vpop.f32.mrf.mxu0
        %v1010 = vadd.f32 0.0, %v1009
        %v1011 = vpop.f32.mrf.mxu0
        %1012 = vdwg.mxu0
        %v1013 = vsel %vm790, %v698, 0
        %v1015 = vsel %vm790, %v789, 0
        %1017 = vmatprep.subr.mxu0 0.0
        %1018 = vmatpush1.xpose.msra.mxu0 0.0
        %1019 = vmatprep.subr.mxu0 0.0
        %1020 = vmatpush1.xpose.msra.mxu0 0.0
        %1021 = vmatprep.subr.mxu0 0.0
        %1022 = vmatpush1.xpose.msra.mxu0 0.0
        %1023 = vmatprep.subr.mxu0 0.0
        %1024 = vmatpush1.xpose.msra.mxu0 0.0
        %1025 = vmatprep.subr.mxu0 0.0
        %1026 = vmatpush1.xpose.msra.mxu0 0.0
        %1027 = vmatprep.subr.mxu0 0.0
        %1028 = vmatpush1.xpose.msra.mxu0 0.0
        %1029 = vmatprep.subr.mxu0 0.0
        %1030 = vmatpush1.xpose.msra.mxu0 0.0
        %1031 = vmatprep.subr.mxu0 0.0
        %1032 = vmatpush1.xpose.msra.mxu0 0.0
        %1033 = vmatprep.subr.mxu0 0.0
        %1034 = vmatpush1.xpose.msra.mxu0 0.0
        %1035 = vmatprep.subr.mxu0 0.0
        %1036 = vmatpush1.xpose.msra.mxu0 0.0
        %1037 = vmatprep.subr.mxu0 0.0
        %1038 = vmatpush1.xpose.msra.mxu0 0.0
        %1039 = vmatprep.subr.mxu0 0.0
        %1040 = vmatpush1.xpose.msra.mxu0 0.0
        %1041 = vmatprep.subr.mxu0 0.0
        %1042 = vmatpush1.xpose.msra.mxu0 0.0
        %1043 = vmatprep.subr.mxu0 0.0
        %1044 = vmatpush1.xpose.msra.mxu0 0.0
        %1045 = vmatprep.subr.mxu0 0.0
        %1046 = vmatpush1.xpose.msra.mxu0 0.0
        %1047 = vmatprep.subr.mxu0 0.0
        %1048 = vmatpush1.xpose.msra.mxu0 %v1015
        %1049 = vmatprep.subr.mxu0 0.0
        %1050 = vmatpush2.xpose.msra.mxu0 0.0
        %1051 = vmatprep.subr.mxu0 0.0
        %1052 = vmatpush2.xpose.msra.mxu0 0.0
        %1053 = vmatprep.subr.mxu0 0.0
        %1054 = vmatpush2.xpose.msra.mxu0 0.0
        %1055 = vmatprep.subr.mxu0 0.0
        %1056 = vmatpush2.xpose.msra.mxu0 0.0
        %1057 = vmatprep.subr.mxu0 0.0
        %1058 = vmatpush2.xpose.msra.mxu0 0.0
        %1059 = vmatprep.subr.mxu0 0.0
        %1060 = vmatpush2.xpose.msra.mxu0 0.0
        %1061 = vmatprep.subr.mxu0 0.0
        %1062 = vmatpush2.xpose.msra.mxu0 0.0
        %1063 = vmatprep.subr.mxu0 0.0
        %1064 = vmatpush2.xpose.msra.mxu0 0.0
        %1065 = vmatprep.subr.mxu0 0.0
        %1066 = vmatpush2.xpose.msra.mxu0 0.0
        %1067 = vmatprep.subr.mxu0 0.0
        %1068 = vmatpush2.xpose.msra.mxu0 0.0
        %1069 = vmatprep.subr.mxu0 0.0
        %1070 = vmatpush2.xpose.msra.mxu0 0.0
        %1071 = vmatprep.subr.mxu0 0.0
        %1072 = vmatpush2.xpose.msra.mxu0 0.0
        %1073 = vmatprep.subr.mxu0 0.0
        %1074 = vmatpush2.xpose.msra.mxu0 0.0
        %1075 = vmatprep.subr.mxu0 0.0
        %1076 = vmatpush2.xpose.msra.mxu0 0.0
        %1077 = vmatprep.subr.mxu0 0.0
        %1078 = vmatpush2.xpose.msra.mxu0 0.0
        %1079 = vmatprep.subr.mxu0 0.0
        %1080 = vmatpush2.xpose.msra.mxu0 0.0
        %1081 = vmatprep.mubr.f32.mxu0 0.0
        %1082 = vmatmul.mubr.f32.gmra.mxu0 %v1013
        %v1083 = vpop.f32.mrf.mxu0
        %v1084 = vadd.f32 0.0, %v1083
        %v1085 = vpop.f32.mrf.mxu0
        %1086 = vdwg.mxu0
        %v1087 = vsel %vm790, %v862, -inf
        %1088 = vmax.xlane.f32.xlu0 %v1087
        %v1089 = vpop.xlane.xlu0 %1088
        %v1090 = vsel %vm790, %v936, -inf
        %1091 = vmax.xlane.f32.xlu0 %v1090
        %v1092 = vpop.xlane.xlu0 %1091
        %v1093 = vsel %vm790, %v1010, -inf
        %1094 = vmax.xlane.f32.xlu0 %v1093
        %v1095 = vpop.xlane.xlu0 %1094
        %v1096 = vsel %vm790, %v1084, -inf
        %1097 = vmax.xlane.f32.xlu0 %v1096
        %v1098 = vpop.xlane.xlu0 %1097
        %v1099 = vsub.f32 %v862, %v1089
        %v1100 = vsub.f32 %v936, %v1092
        %v1101 = vsub.f32 %v1010, %v1095
        %v1102 = vsub.f32 %v1084, %v1098
        %v1103 = vmul.f32 %v1099, 1.442695
        %v1104 = vpow.pop %v1103
        %v1105 = vmul.f32 %v1100, 1.442695
        %v1106 = vpow.pop %v1105
        %v1107 = vmul.f32 %v1101, 1.442695
        %v1108 = vpow.pop %v1107
        %v1109 = vmul.f32 %v1102, 1.442695
        %v1110 = vpow.pop %v1109
        %v1111 = vsel %vm790, %v1104, 0.0
        %1112 = vadd.xlane.f32.xlu0 %v1111
        %v1113 = vpop.xlane.xlu0 %1112
        %v1114 = vsel %vm790, %v1106, 0.0
        %1115 = vadd.xlane.f32.xlu0 %v1114
        %v1116 = vpop.xlane.xlu0 %1115
        %v1117 = vsel %vm790, %v1108, 0.0
        %1118 = vadd.xlane.f32.xlu0 %v1117
        %v1119 = vpop.xlane.xlu0 %1118
        %v1120 = vsel %vm790, %v1110, 0.0
        %1121 = vadd.xlane.f32.xlu0 %v1120
        %v1122 = vpop.xlane.xlu0 %1121
        %v1123 = vrcp.pop %v1113
        %v1124 = vrcp.pop %v1116
        %v1125 = vrcp.pop %v1119
        %v1126 = vrcp.pop %v1122
        %v1127 = vmul.f32 %v1104, %v1123
        %v1128 = vmul.f32 %v1106, %v1124
        %v1129 = vmul.f32 %v1108, %v1125
        %v1130 = vmul.f32 %v1110, %v1126
        %1131 = vrot.lane.b32.xlu0 %v780, 96
        %v1132 = vpop.permute.xlu0 %1131
        %v1135 = vsel %vm790, %v1127, 0
        %1137 = vmatprep.subr.mxu0 0.0
        %1138 = vmatpush1.msra.mxu0 0.0
        %1139 = vmatprep.subr.mxu0 0.0
        %1140 = vmatpush1.msra.mxu0 0.0
        %1141 = vmatprep.subr.mxu0 0.0
        %1142 = vmatpush1.msra.mxu0 0.0
        %1143 = vmatprep.subr.mxu0 0.0
        %1144 = vmatpush1.msra.mxu0 0.0
        %1145 = vmatprep.subr.mxu0 0.0
        %1146 = vmatpush1.msra.mxu0 0.0
        %1147 = vmatprep.subr.mxu0 0.0
        %1148 = vmatpush1.msra.mxu0 0.0
        %1149 = vmatprep.subr.mxu0 0.0
        %1150 = vmatpush1.msra.mxu0 0.0
        %1151 = vmatprep.subr.mxu0 0.0
        %1152 = vmatpush1.msra.mxu0 0.0
        %1153 = vmatprep.subr.mxu0 0.0
        %1154 = vmatpush1.msra.mxu0 0.0
        %1155 = vmatprep.subr.mxu0 0.0
        %1156 = vmatpush1.msra.mxu0 0.0
        %1157 = vmatprep.subr.mxu0 0.0
        %1158 = vmatpush1.msra.mxu0 0.0
        %1159 = vmatprep.subr.mxu0 0.0
        %1160 = vmatpush1.msra.mxu0 0.0
        %1161 = vmatprep.subr.mxu0 0.0
        %1162 = vmatpush1.msra.mxu0 0.0
        %1163 = vmatprep.subr.mxu0 0.0
        %1164 = vmatpush1.msra.mxu0 0.0
        %1165 = vmatprep.subr.mxu0 0.0
        %1166 = vmatpush1.msra.mxu0 0.0
        %1167 = vmatprep.subr.mxu0 0.0
        %1168 = vmatpush1.msra.mxu0 %v1132
        %1169 = vmatprep.subr.mxu0 0.0
        %1170 = vmatpush2.msra.mxu0 0.0
        %1171 = vmatprep.subr.mxu0 0.0
        %1172 = vmatpush2.msra.mxu0 0.0
        %1173 = vmatprep.subr.mxu0 0.0
        %1174 = vmatpush2.msra.mxu0 0.0
        %1175 = vmatprep.subr.mxu0 0.0
        %1176 = vmatpush2.msra.mxu0 0.0
        %1177 = vmatprep.subr.mxu0 0.0
        %1178 = vmatpush2.msra.mxu0 0.0
        %1179 = vmatprep.subr.mxu0 0.0
        %1180 = vmatpush2.msra.mxu0 0.0
        %1181 = vmatprep.subr.mxu0 0.0
        %1182 = vmatpush2.msra.mxu0 0.0
        %1183 = vmatprep.subr.mxu0 0.0
        %1184 = vmatpush2.msra.mxu0 0.0
        %1185 = vmatprep.subr.mxu0 0.0
        %1186 = vmatpush2.msra.mxu0 0.0
        %1187 = vmatprep.subr.mxu0 0.0
        %1188 = vmatpush2.msra.mxu0 0.0
        %1189 = vmatprep.subr.mxu0 0.0
        %1190 = vmatpush2.msra.mxu0 0.0
        %1191 = vmatprep.subr.mxu0 0.0
        %1192 = vmatpush2.msra.mxu0 0.0
        %1193 = vmatprep.subr.mxu0 0.0
        %1194 = vmatpush2.msra.mxu0 0.0
        %1195 = vmatprep.subr.mxu0 0.0
        %1196 = vmatpush2.msra.mxu0 0.0
        %1197 = vmatprep.subr.mxu0 0.0
        %1198 = vmatpush2.msra.mxu0 0.0
        %1199 = vmatprep.subr.mxu0 0.0
        %1200 = vmatpush2.msra.mxu0 0.0
        %1201 = vmatprep.mubr.f32.mxu0 0.0
        %1202 = vmatmul.mubr.f32.gmra.mxu0 %v1135
        %v1203 = vpop.f32.mrf.mxu0
        %v1204 = vadd.f32 0.0, %v1203
        %v1205 = vpop.f32.mrf.mxu0
        %1206 = vdwg.mxu0
        %1207 = vrot.lane.b32.xlu0 %v785, 96
        %v1208 = vpop.permute.xlu0 %1207
        %v1211 = vsel %vm790, %v1128, 0
        %1213 = vmatprep.subr.mxu0 0.0
        %1214 = vmatpush1.msra.mxu0 0.0
        %1215 = vmatprep.subr.mxu0 0.0
        %1216 = vmatpush1.msra.mxu0 0.0
        %1217 = vmatprep.subr.mxu0 0.0
        %1218 = vmatpush1.msra.mxu0 0.0
        %1219 = vmatprep.subr.mxu0 0.0
        %1220 = vmatpush1.msra.mxu0 0.0
        %1221 = vmatprep.subr.mxu0 0.0
        %1222 = vmatpush1.msra.mxu0 0.0
        %1223 = vmatprep.subr.mxu0 0.0
        %1224 = vmatpush1.msra.mxu0 0.0
        %1225 = vmatprep.subr.mxu0 0.0
        %1226 = vmatpush1.msra.mxu0 0.0
        %1227 = vmatprep.subr.mxu0 0.0
        %1228 = vmatpush1.msra.mxu0 0.0
        %1229 = vmatprep.subr.mxu0 0.0
        %1230 = vmatpush1.msra.mxu0 0.0
        %1231 = vmatprep.subr.mxu0 0.0
        %1232 = vmatpush1.msra.mxu0 0.0
        %1233 = vmatprep.subr.mxu0 0.0
        %1234 = vmatpush1.msra.mxu0 0.0
        %1235 = vmatprep.subr.mxu0 0.0
        %1236 = vmatpush1.msra.mxu0 0.0
        %1237 = vmatprep.subr.mxu0 0.0
        %1238 = vmatpush1.msra.mxu0 0.0
        %1239 = vmatprep.subr.mxu0 0.0
        %1240 = vmatpush1.msra.mxu0 0.0
        %1241 = vmatprep.subr.mxu0 0.0
        %1242 = vmatpush1.msra.mxu0 0.0
        %1243 = vmatprep.subr.mxu0 0.0
        %1244 = vmatpush1.msra.mxu0 %v1208
        %1245 = vmatprep.subr.mxu0 0.0
        %1246 = vmatpush2.msra.mxu0 0.0
        %1247 = vmatprep.subr.mxu0 0.0
        %1248 = vmatpush2.msra.mxu0 0.0
        %1249 = vmatprep.subr.mxu0 0.0
        %1250 = vmatpush2.msra.mxu0 0.0
        %1251 = vmatprep.subr.mxu0 0.0
        %1252 = vmatpush2.msra.mxu0 0.0
        %1253 = vmatprep.subr.mxu0 0.0
        %1254 = vmatpush2.msra.mxu0 0.0
        %1255 = vmatprep.subr.mxu0 0.0
        %1256 = vmatpush2.msra.mxu0 0.0
        %1257 = vmatprep.subr.mxu0 0.0
        %1258 = vmatpush2.msra.mxu0 0.0
        %1259 = vmatprep.subr.mxu0 0.0
        %1260 = vmatpush2.msra.mxu0 0.0
        %1261 = vmatprep.subr.mxu0 0.0
        %1262 = vmatpush2.msra.mxu0 0.0
        %1263 = vmatprep.subr.mxu0 0.0
        %1264 = vmatpush2.msra.mxu0 0.0
        %1265 = vmatprep.subr.mxu0 0.0
        %1266 = vmatpush2.msra.mxu0 0.0
        %1267 = vmatprep.subr.mxu0 0.0
        %1268 = vmatpush2.msra.mxu0 0.0
        %1269 = vmatprep.subr.mxu0 0.0
        %1270 = vmatpush2.msra.mxu0 0.0
        %1271 = vmatprep.subr.mxu0 0.0
        %1272 = vmatpush2.msra.mxu0 0.0
        %1273 = vmatprep.subr.mxu0 0.0
        %1274 = vmatpush2.msra.mxu0 0.0
        %1275 = vmatprep.subr.mxu0 0.0
        %1276 = vmatpush2.msra.mxu0 0.0
        %1277 = vmatprep.mubr.f32.mxu0 0.0
        %1278 = vmatmul.mubr.f32.gmra.mxu0 %v1211
        %v1279 = vpop.f32.mrf.mxu0
        %v1280 = vadd.f32 0.0, %v1279
        %v1281 = vpop.f32.mrf.mxu0
        %1282 = vdwg.mxu0
        %1283 = vrot.lane.b32.xlu0 %v787, 96
        %v1284 = vpop.permute.xlu0 %1283
        %v1287 = vsel %vm790, %v1129, 0
        %1289 = vmatprep.subr.mxu0 0.0
        %1290 = vmatpush1.msra.mxu0 0.0
        %1291 = vmatprep.subr.mxu0 0.0
        %1292 = vmatpush1.msra.mxu0 0.0
        %1293 = vmatprep.subr.mxu0 0.0
        %1294 = vmatpush1.msra.mxu0 0.0
        %1295 = vmatprep.subr.mxu0 0.0
        %1296 = vmatpush1.msra.mxu0 0.0
        %1297 = vmatprep.subr.mxu0 0.0
        %1298 = vmatpush1.msra.mxu0 0.0
        %1299 = vmatprep.subr.mxu0 0.0
        %1300 = vmatpush1.msra.mxu0 0.0
        %1301 = vmatprep.subr.mxu0 0.0
        %1302 = vmatpush1.msra.mxu0 0.0
        %1303 = vmatprep.subr.mxu0 0.0
        %1304 = vmatpush1.msra.mxu0 0.0
        %1305 = vmatprep.subr.mxu0 0.0
        %1306 = vmatpush1.msra.mxu0 0.0
        %1307 = vmatprep.subr.mxu0 0.0
        %1308 = vmatpush1.msra.mxu0 0.0
        %1309 = vmatprep.subr.mxu0 0.0
        %1310 = vmatpush1.msra.mxu0 0.0
        %1311 = vmatprep.subr.mxu0 0.0
        %1312 = vmatpush1.msra.mxu0 0.0
        %1313 = vmatprep.subr.mxu0 0.0
        %1314 = vmatpush1.msra.mxu0 0.0
        %1315 = vmatprep.subr.mxu0 0.0
        %1316 = vmatpush1.msra.mxu0 0.0
        %1317 = vmatprep.subr.mxu0 0.0
        %1318 = vmatpush1.msra.mxu0 0.0
        %1319 = vmatprep.subr.mxu0 0.0
        %1320 = vmatpush1.msra.mxu0 %v1284
        %1321 = vmatprep.subr.mxu0 0.0
        %1322 = vmatpush2.msra.mxu0 0.0
        %1323 = vmatprep.subr.mxu0 0.0
        %1324 = vmatpush2.msra.mxu0 0.0
        %1325 = vmatprep.subr.mxu0 0.0
        %1326 = vmatpush2.msra.mxu0 0.0
        %1327 = vmatprep.subr.mxu0 0.0
        %1328 = vmatpush2.msra.mxu0 0.0
        %1329 = vmatprep.subr.mxu0 0.0
        %1330 = vmatpush2.msra.mxu0 0.0
        %1331 = vmatprep.subr.mxu0 0.0
        %1332 = vmatpush2.msra.mxu0 0.0
        %1333 = vmatprep.subr.mxu0 0.0
        %1334 = vmatpush2.msra.mxu0 0.0
        %1335 = vmatprep.subr.mxu0 0.0
        %1336 = vmatpush2.msra.mxu0 0.0
        %1337 = vmatprep.subr.mxu0 0.0
        %1338 = vmatpush2.msra.mxu0 0.0
        %1339 = vmatprep.subr.mxu0 0.0
        %1340 = vmatpush2.msra.mxu0 0.0
        %1341 = vmatprep.subr.mxu0 0.0
        %1342 = vmatpush2.msra.mxu0 0.0
        %1343 = vmatprep.subr.mxu0 0.0
        %1344 = vmatpush2.msra.mxu0 0.0
        %1345 = vmatprep.subr.mxu0 0.0
        %1346 = vmatpush2.msra.mxu0 0.0
        %1347 = vmatprep.subr.mxu0 0.0
        %1348 = vmatpush2.msra.mxu0 0.0
        %1349 = vmatprep.subr.mxu0 0.0
        %1350 = vmatpush2.msra.mxu0 0.0
        %1351 = vmatprep.subr.mxu0 0.0
        %1352 = vmatpush2.msra.mxu0 0.0
        %1353 = vmatprep.mubr.f32.mxu0 0.0
        %1354 = vmatmul.mubr.f32.gmra.mxu0 %v1287
        %v1355 = vpop.f32.mrf.mxu0
        %v1356 = vadd.f32 0.0, %v1355
        %v1357 = vpop.f32.mrf.mxu0
        %1358 = vdwg.mxu0
        %1359 = vrot.lane.b32.xlu0 %v789, 96
        %v1360 = vpop.permute.xlu0 %1359
        %v1363 = vsel %vm790, %v1130, 0
        %1365 = vmatprep.subr.mxu0 0.0
        %1366 = vmatpush1.msra.mxu0 0.0
        %1367 = vmatprep.subr.mxu0 0.0
        %1368 = vmatpush1.msra.mxu0 0.0
        %1369 = vmatprep.subr.mxu0 0.0
        %1370 = vmatpush1.msra.mxu0 0.0
        %1371 = vmatprep.subr.mxu0 0.0
        %1372 = vmatpush1.msra.mxu0 0.0
        %1373 = vmatprep.subr.mxu0 0.0
        %1374 = vmatpush1.msra.mxu0 0.0
        %1375 = vmatprep.subr.mxu0 0.0
        %1376 = vmatpush1.msra.mxu0 0.0
        %1377 = vmatprep.subr.mxu0 0.0
        %1378 = vmatpush1.msra.mxu0 0.0
        %1379 = vmatprep.subr.mxu0 0.0
        %1380 = vmatpush1.msra.mxu0 0.0
        %1381 = vmatprep.subr.mxu0 0.0
        %1382 = vmatpush1.msra.mxu0 0.0
        %1383 = vmatprep.subr.mxu0 0.0
        %1384 = vmatpush1.msra.mxu0 0.0
        %1385 = vmatprep.subr.mxu0 0.0
        %1386 = vmatpush1.msra.mxu0 0.0
        %1387 = vmatprep.subr.mxu0 0.0
        %1388 = vmatpush1.msra.mxu0 0.0
        %1389 = vmatprep.subr.mxu0 0.0
        %1390 = vmatpush1.msra.mxu0 0.0
        %1391 = vmatprep.subr.mxu0 0.0
        %1392 = vmatpush1.msra.mxu0 0.0
        %1393 = vmatprep.subr.mxu0 0.0
        %1394 = vmatpush1.msra.mxu0 0.0
        %1395 = vmatprep.subr.mxu0 0.0
        %1396 = vmatpush1.msra.mxu0 %v1360
        %1397 = vmatprep.subr.mxu0 0.0
        %1398 = vmatpush2.msra.mxu0 0.0
        %1399 = vmatprep.subr.mxu0 0.0
        %1400 = vmatpush2.msra.mxu0 0.0
        %1401 = vmatprep.subr.mxu0 0.0
        %1402 = vmatpush2.msra.mxu0 0.0
        %1403 = vmatprep.subr.mxu0 0.0
        %1404 = vmatpush2.msra.mxu0 0.0
        %1405 = vmatprep.subr.mxu0 0.0
        %1406 = vmatpush2.msra.mxu0 0.0
        %1407 = vmatprep.subr.mxu0 0.0
        %1408 = vmatpush2.msra.mxu0 0.0
        %1409 = vmatprep.subr.mxu0 0.0
        %1410 = vmatpush2.msra.mxu0 0.0
        %1411 = vmatprep.subr.mxu0 0.0
        %1412 = vmatpush2.msra.mxu0 0.0
        %1413 = vmatprep.subr.mxu0 0.0
        %1414 = vmatpush2.msra.mxu0 0.0
        %1415 = vmatprep.subr.mxu0 0.0
        %1416 = vmatpush2.msra.mxu0 0.0
        %1417 = vmatprep.subr.mxu0 0.0
        %1418 = vmatpush2.msra.mxu0 0.0
        %1419 = vmatprep.subr.mxu0 0.0
        %1420 = vmatpush2.msra.mxu0 0.0
        %1421 = vmatprep.subr.mxu0 0.0
        %1422 = vmatpush2.msra.mxu0 0.0
        %1423 = vmatprep.subr.mxu0 0.0
        %1424 = vmatpush2.msra.mxu0 0.0
        %1425 = vmatprep.subr.mxu0 0.0
        %1426 = vmatpush2.msra.mxu0 0.0
        %1427 = vmatprep.subr.mxu0 0.0
        %1428 = vmatpush2.msra.mxu0 0.0
        %1429 = vmatprep.mubr.f32.mxu0 0.0
        %1430 = vmatmul.mubr.f32.gmra.mxu0 %v1363
        %v1431 = vpop.f32.mrf.mxu0
        %v1432 = vadd.f32 0.0, %v1431
        %v1433 = vpop.f32.mrf.mxu0
        %1434 = vdwg.mxu0
        %v1435 = vld [vmem:[%s6] sm:$0xff]
        %v1436 = vld [vmem:[%s6 + $0x8] sm:$0xff]
        %v1437 = vld [vmem:[%s6 + $0x10] sm:$0xff]
        %v1438 = vld [vmem:[%s6 + $0x18] sm:$0xff]
        %v1440 = vsel %vm790, %v1204, 0
        %1442 = vmatprep.subr.mxu0 0.0
        %1443 = vmatpush1.msra.mxu0 0.0
        %1444 = vmatprep.subr.mxu0 0.0
        %1445 = vmatpush1.msra.mxu0 0.0
        %1446 = vmatprep.subr.mxu0 0.0
        %1447 = vmatpush1.msra.mxu0 0.0
        %1448 = vmatprep.subr.mxu0 0.0
        %1449 = vmatpush1.msra.mxu0 0.0
        %1450 = vmatprep.subr.mxu0 0.0
        %1451 = vmatpush1.msra.mxu0 0.0
        %1452 = vmatprep.subr.mxu0 0.0
        %1453 = vmatpush1.msra.mxu0 0.0
        %1454 = vmatprep.subr.mxu0 0.0
        %1455 = vmatpush1.msra.mxu0 0.0
        %1456 = vmatprep.subr.mxu0 0.0
        %1457 = vmatpush1.msra.mxu0 0.0
        %1458 = vmatprep.subr.mxu0 0.0
        %1459 = vmatpush1.msra.mxu0 0.0
        %1460 = vmatprep.subr.mxu0 0.0
        %1461 = vmatpush1.msra.mxu0 0.0
        %1462 = vmatprep.subr.mxu0 0.0
        %1463 = vmatpush1.msra.mxu0 0.0
        %1464 = vmatprep.subr.mxu0 0.0
        %1465 = vmatpush1.msra.mxu0 0.0
        %1466 = vmatprep.subr.mxu0 0.0
        %1467 = vmatpush1.msra.mxu0 0.0
        %1468 = vmatprep.subr.mxu0 0.0
        %1469 = vmatpush1.msra.mxu0 0.0
        %1470 = vmatprep.subr.mxu0 0.0
        %1471 = vmatpush1.msra.mxu0 0.0
        %1472 = vmatprep.subr.mxu0 0.0
        %1473 = vmatpush1.msra.mxu0 %v1435
        %1474 = vmatprep.subr.mxu0 0.0
        %1475 = vmatpush2.msra.mxu0 0.0
        %1476 = vmatprep.subr.mxu0 0.0
        %1477 = vmatpush2.msra.mxu0 0.0
        %1478 = vmatprep.subr.mxu0 0.0
        %1479 = vmatpush2.msra.mxu0 0.0
        %1480 = vmatprep.subr.mxu0 0.0
        %1481 = vmatpush2.msra.mxu0 0.0
        %1482 = vmatprep.subr.mxu0 0.0
        %1483 = vmatpush2.msra.mxu0 0.0
        %1484 = vmatprep.subr.mxu0 0.0
        %1485 = vmatpush2.msra.mxu0 0.0
        %1486 = vmatprep.subr.mxu0 0.0
        %1487 = vmatpush2.msra.mxu0 0.0
        %1488 = vmatprep.subr.mxu0 0.0
        %1489 = vmatpush2.msra.mxu0 0.0
        %1490 = vmatprep.subr.mxu0 0.0
        %1491 = vmatpush2.msra.mxu0 0.0
        %1492 = vmatprep.subr.mxu0 0.0
        %1493 = vmatpush2.msra.mxu0 0.0
        %1494 = vmatprep.subr.mxu0 0.0
        %1495 = vmatpush2.msra.mxu0 0.0
        %1496 = vmatprep.subr.mxu0 0.0
        %1497 = vmatpush2.msra.mxu0 0.0
        %1498 = vmatprep.subr.mxu0 0.0
        %1499 = vmatpush2.msra.mxu0 0.0
        %1500 = vmatprep.subr.mxu0 0.0
        %1501 = vmatpush2.msra.mxu0 0.0
        %1502 = vmatprep.subr.mxu0 0.0
        %1503 = vmatpush2.msra.mxu0 0.0
        %1504 = vmatprep.subr.mxu0 0.0
        %1505 = vmatpush2.msra.mxu0 0.0
        %1506 = vmatprep.mubr.f32.mxu0 0.0
        %1507 = vmatmul.mubr.f32.gmra.mxu0 %v1440
        %v1508 = vpop.f32.mrf.mxu0
        %v1509 = vadd.f32 0.0, %v1508
        %v1510 = vpop.f32.mrf.mxu0
        %1511 = vdwg.mxu0
        %v1513 = vsel %vm790, %v1280, 0
        %1515 = vmatprep.subr.mxu0 0.0
        %1516 = vmatpush1.msra.mxu0 0.0
        %1517 = vmatprep.subr.mxu0 0.0
        %1518 = vmatpush1.msra.mxu0 0.0
        %1519 = vmatprep.subr.mxu0 0.0
        %1520 = vmatpush1.msra.mxu0 0.0
        %1521 = vmatprep.subr.mxu0 0.0
        %1522 = vmatpush1.msra.mxu0 0.0
        %1523 = vmatprep.subr.mxu0 0.0
        %1524 = vmatpush1.msra.mxu0 0.0
        %1525 = vmatprep.subr.mxu0 0.0
        %1526 = vmatpush1.msra.mxu0 0.0
        %1527 = vmatprep.subr.mxu0 0.0
        %1528 = vmatpush1.msra.mxu0 0.0
        %1529 = vmatprep.subr.mxu0 0.0
        %1530 = vmatpush1.msra.mxu0 0.0
        %1531 = vmatprep.subr.mxu0 0.0
        %1532 = vmatpush1.msra.mxu0 0.0
        %1533 = vmatprep.subr.mxu0 0.0
        %1534 = vmatpush1.msra.mxu0 0.0
        %1535 = vmatprep.subr.mxu0 0.0
        %1536 = vmatpush1.msra.mxu0 0.0
        %1537 = vmatprep.subr.mxu0 0.0
        %1538 = vmatpush1.msra.mxu0 0.0
        %1539 = vmatprep.subr.mxu0 0.0
        %1540 = vmatpush1.msra.mxu0 0.0
        %1541 = vmatprep.subr.mxu0 0.0
        %1542 = vmatpush1.msra.mxu0 0.0
        %1543 = vmatprep.subr.mxu0 0.0
        %1544 = vmatpush1.msra.mxu0 0.0
        %1545 = vmatprep.subr.mxu0 0.0
        %1546 = vmatpush1.msra.mxu0 %v1436
        %1547 = vmatprep.subr.mxu0 0.0
        %1548 = vmatpush2.msra.mxu0 0.0
        %1549 = vmatprep.subr.mxu0 0.0
        %1550 = vmatpush2.msra.mxu0 0.0
        %1551 = vmatprep.subr.mxu0 0.0
        %1552 = vmatpush2.msra.mxu0 0.0
        %1553 = vmatprep.subr.mxu0 0.0
        %1554 = vmatpush2.msra.mxu0 0.0
        %1555 = vmatprep.subr.mxu0 0.0
        %1556 = vmatpush2.msra.mxu0 0.0
        %1557 = vmatprep.subr.mxu0 0.0
        %1558 = vmatpush2.msra.mxu0 0.0
        %1559 = vmatprep.subr.mxu0 0.0
        %1560 = vmatpush2.msra.mxu0 0.0
        %1561 = vmatprep.subr.mxu0 0.0
        %1562 = vmatpush2.msra.mxu0 0.0
        %1563 = vmatprep.subr.mxu0 0.0
        %1564 = vmatpush2.msra.mxu0 0.0
        %1565 = vmatprep.subr.mxu0 0.0
        %1566 = vmatpush2.msra.mxu0 0.0
        %1567 = vmatprep.subr.mxu0 0.0
        %1568 = vmatpush2.msra.mxu0 0.0
        %1569 = vmatprep.subr.mxu0 0.0
        %1570 = vmatpush2.msra.mxu0 0.0
        %1571 = vmatprep.subr.mxu0 0.0
        %1572 = vmatpush2.msra.mxu0 0.0
        %1573 = vmatprep.subr.mxu0 0.0
        %1574 = vmatpush2.msra.mxu0 0.0
        %1575 = vmatprep.subr.mxu0 0.0
        %1576 = vmatpush2.msra.mxu0 0.0
        %1577 = vmatprep.subr.mxu0 0.0
        %1578 = vmatpush2.msra.mxu0 0.0
        %1579 = vmatprep.mubr.f32.mxu0 0.0
        %1580 = vmatmul.mubr.f32.gmra.mxu0 %v1513
        %v1581 = vpop.f32.mrf.mxu0
        %v1582 = vadd.f32 0.0, %v1581
        %v1583 = vpop.f32.mrf.mxu0
        %1584 = vdwg.mxu0
        %v1586 = vsel %vm790, %v1356, 0
        %1588 = vmatprep.subr.mxu0 0.0
        %1589 = vmatpush1.msra.mxu0 0.0
        %1590 = vmatprep.subr.mxu0 0.0
        %1591 = vmatpush1.msra.mxu0 0.0
        %1592 = vmatprep.subr.mxu0 0.0
        %1593 = vmatpush1.msra.mxu0 0.0
        %1594 = vmatprep.subr.mxu0 0.0
        %1595 = vmatpush1.msra.mxu0 0.0
        %1596 = vmatprep.subr.mxu0 0.0
        %1597 = vmatpush1.msra.mxu0 0.0
        %1598 = vmatprep.subr.mxu0 0.0
        %1599 = vmatpush1.msra.mxu0 0.0
        %1600 = vmatprep.subr.mxu0 0.0
        %1601 = vmatpush1.msra.mxu0 0.0
        %1602 = vmatprep.subr.mxu0 0.0
        %1603 = vmatpush1.msra.mxu0 0.0
        %1604 = vmatprep.subr.mxu0 0.0
        %1605 = vmatpush1.msra.mxu0 0.0
        %1606 = vmatprep.subr.mxu0 0.0
        %1607 = vmatpush1.msra.mxu0 0.0
        %1608 = vmatprep.subr.mxu0 0.0
        %1609 = vmatpush1.msra.mxu0 0.0
        %1610 = vmatprep.subr.mxu0 0.0
        %1611 = vmatpush1.msra.mxu0 0.0
        %1612 = vmatprep.subr.mxu0 0.0
        %1613 = vmatpush1.msra.mxu0 0.0
        %1614 = vmatprep.subr.mxu0 0.0
        %1615 = vmatpush1.msra.mxu0 0.0
        %1616 = vmatprep.subr.mxu0 0.0
        %1617 = vmatpush1.msra.mxu0 0.0
        %1618 = vmatprep.subr.mxu0 0.0
        %1619 = vmatpush1.msra.mxu0 %v1437
        %1620 = vmatprep.subr.mxu0 0.0
        %1621 = vmatpush2.msra.mxu0 0.0
        %1622 = vmatprep.subr.mxu0 0.0
        %1623 = vmatpush2.msra.mxu0 0.0
        %1624 = vmatprep.subr.mxu0 0.0
        %1625 = vmatpush2.msra.mxu0 0.0
        %1626 = vmatprep.subr.mxu0 0.0
        %1627 = vmatpush2.msra.mxu0 0.0
        %1628 = vmatprep.subr.mxu0 0.0
        %1629 = vmatpush2.msra.mxu0 0.0
        %1630 = vmatprep.subr.mxu0 0.0
        %1631 = vmatpush2.msra.mxu0 0.0
        %1632 = vmatprep.subr.mxu0 0.0
        %1633 = vmatpush2.msra.mxu0 0.0
        %1634 = vmatprep.subr.mxu0 0.0
        %1635 = vmatpush2.msra.mxu0 0.0
        %1636 = vmatprep.subr.mxu0 0.0
        %1637 = vmatpush2.msra.mxu0 0.0
        %1638 = vmatprep.subr.mxu0 0.0
        %1639 = vmatpush2.msra.mxu0 0.0
        %1640 = vmatprep.subr.mxu0 0.0
        %1641 = vmatpush2.msra.mxu0 0.0
        %1642 = vmatprep.subr.mxu0 0.0
        %1643 = vmatpush2.msra.mxu0 0.0
        %1644 = vmatprep.subr.mxu0 0.0
        %1645 = vmatpush2.msra.mxu0 0.0
        %1646 = vmatprep.subr.mxu0 0.0
        %1647 = vmatpush2.msra.mxu0 0.0
        %1648 = vmatprep.subr.mxu0 0.0
        %1649 = vmatpush2.msra.mxu0 0.0
        %1650 = vmatprep.subr.mxu0 0.0
        %1651 = vmatpush2.msra.mxu0 0.0
        %1652 = vmatprep.mubr.f32.mxu0 0.0
        %1653 = vmatmul.mubr.f32.gmra.mxu0 %v1586
        %v1654 = vpop.f32.mrf.mxu0
        %v1655 = vadd.f32 0.0, %v1654
        %v1656 = vpop.f32.mrf.mxu0
        %1657 = vdwg.mxu0
        %v1659 = vsel %vm790, %v1432, 0
        %1661 = vmatprep.subr.mxu0 0.0
        %1662 = vmatpush1.msra.mxu0 0.0
        %1663 = vmatprep.subr.mxu0 0.0
        %1664 = vmatpush1.msra.mxu0 0.0
        %1665 = vmatprep.subr.mxu0 0.0
        %1666 = vmatpush1.msra.mxu0 0.0
        %1667 = vmatprep.subr.mxu0 0.0
        %1668 = vmatpush1.msra.mxu0 0.0
        %1669 = vmatprep.subr.mxu0 0.0
        %1670 = vmatpush1.msra.mxu0 0.0
        %1671 = vmatprep.subr.mxu0 0.0
        %1672 = vmatpush1.msra.mxu0 0.0
        %1673 = vmatprep.subr.mxu0 0.0
        %1674 = vmatpush1.msra.mxu0 0.0
        %1675 = vmatprep.subr.mxu0 0.0
        %1676 = vmatpush1.msra.mxu0 0.0
        %1677 = vmatprep.subr.mxu0 0.0
        %1678 = vmatpush1.msra.mxu0 0.0
        %1679 = vmatprep.subr.mxu0 0.0
        %1680 = vmatpush1.msra.mxu0 0.0
        %1681 = vmatprep.subr.mxu0 0.0
        %1682 = vmatpush1.msra.mxu0 0.0
        %1683 = vmatprep.subr.mxu0 0.0
        %1684 = vmatpush1.msra.mxu0 0.0
        %1685 = vmatprep.subr.mxu0 0.0
        %1686 = vmatpush1.msra.mxu0 0.0
        %1687 = vmatprep.subr.mxu0 0.0
        %1688 = vmatpush1.msra.mxu0 0.0
        %1689 = vmatprep.subr.mxu0 0.0
        %1690 = vmatpush1.msra.mxu0 0.0
        %1691 = vmatprep.subr.mxu0 0.0
        %1692 = vmatpush1.msra.mxu0 %v1438
        %1693 = vmatprep.subr.mxu0 0.0
        %1694 = vmatpush2.msra.mxu0 0.0
        %1695 = vmatprep.subr.mxu0 0.0
        %1696 = vmatpush2.msra.mxu0 0.0
        %1697 = vmatprep.subr.mxu0 0.0
        %1698 = vmatpush2.msra.mxu0 0.0
        %1699 = vmatprep.subr.mxu0 0.0
        %1700 = vmatpush2.msra.mxu0 0.0
        %1701 = vmatprep.subr.mxu0 0.0
        %1702 = vmatpush2.msra.mxu0 0.0
        %1703 = vmatprep.subr.mxu0 0.0
        %1704 = vmatpush2.msra.mxu0 0.0
        %1705 = vmatprep.subr.mxu0 0.0
        %1706 = vmatpush2.msra.mxu0 0.0
        %1707 = vmatprep.subr.mxu0 0.0
        %1708 = vmatpush2.msra.mxu0 0.0
        %1709 = vmatprep.subr.mxu0 0.0
        %1710 = vmatpush2.msra.mxu0 0.0
        %1711 = vmatprep.subr.mxu0 0.0
        %1712 = vmatpush2.msra.mxu0 0.0
        %1713 = vmatprep.subr.mxu0 0.0
        %1714 = vmatpush2.msra.mxu0 0.0
        %1715 = vmatprep.subr.mxu0 0.0
        %1716 = vmatpush2.msra.mxu0 0.0
        %1717 = vmatprep.subr.mxu0 0.0
        %1718 = vmatpush2.msra.mxu0 0.0
        %1719 = vmatprep.subr.mxu0 0.0
        %1720 = vmatpush2.msra.mxu0 0.0
        %1721 = vmatprep.subr.mxu0 0.0
        %1722 = vmatpush2.msra.mxu0 0.0
        %1723 = vmatprep.subr.mxu0 0.0
        %1724 = vmatpush2.msra.mxu0 0.0
        %1725 = vmatprep.mubr.f32.mxu0 0.0
        %1726 = vmatmul.mubr.f32.gmra.mxu0 %v1659
        %v1727 = vpop.f32.mrf.mxu0
        %v1728 = vadd.f32 0.0, %v1727
        %v1729 = vpop.f32.mrf.mxu0
        %1730 = vdwg.mxu0
        %v1731 = vsel %vm618, %v1509, 0.0
        %v1732 = vsel %vm618, %v1582, 0.0
        %v1733 = vadd.f32 %v1731, %v1732
        %v1734 = vsel %vm618, %v1655, 0.0
        %v1735 = vadd.f32 %v1733, %v1734
        %v1736 = vsel %vm618, %v1728, 0.0
        %v1737 = vadd.f32 %v1735, %v1736
        %v1738 = vld [vmem:[%s7] sm:$0x1]
        %v1740 = vlaneseq
        %v1741 = vshrl.u32 %v1740, 7
        %v1742 = vsub.s32 0, %v1741
        %v1743 = vrot.slane %v1738, %v1742
        %v1745 = vadd.f32 %v1737, %v1743
        %v1746 = vadd.f32 %v606, %v1745
        %v1747 = vsel %vm618, %v1746, 0.0
        %1748 = vadd.xlane.f32.xlu0 %v1747
        %v1749 = vpop.xlane.xlu0 %1748
        %v1750 = vrcp.pop 32.0
        %v1751 = vmul.f32 %v1749, %v1750
        %v1752 = vsub.f32 %v1746, %v1751
        %v1753 = vmul.f32 %v1752, %v1752
        %v1754 = vsel %vm618, %v1753, 0.0
        %1755 = vadd.xlane.f32.xlu0 %v1754
        %v1756 = vpop.xlane.xlu0 %1755
        %v1757 = vmul.f32 %v1756, %v1750
        %v1758 = vadd.f32 %v1757, 1e-05
        %v1759 = vrsqrt.pop %v1758
        %v1760 = vmul.f32 %v1752, %v1759
        %v1761 = vld [vmem:[%s12] sm:$0x1]
        %v1763 = vlaneseq
        %v1764 = vshrl.u32 %v1763, 7
        %v1765 = vsub.s32 0, %v1764
        %v1766 = vrot.slane %v1761, %v1765
        %v1768 = vmul.f32 %v1760, %v1766
        %v1769 = vld [vmem:[%s13] sm:$0x1]
        %v1771 = vlaneseq
        %v1772 = vshrl.u32 %v1771, 7
        %v1773 = vsub.s32 0, %v1772
        %v1774 = vrot.slane %v1769, %v1773
        %v1776 = vadd.f32 %v1768, %v1774
        %v1777 = vld [vmem:[#allocation7] sm:$0xff]
        %v1778 = vld [vmem:[#allocation7 + $0x8] sm:$0xff]
        %v1779 = vld [vmem:[#allocation7 + $0x10] sm:$0xff]
        %v1780 = vld [vmem:[#allocation7 + $0x18] sm:$0xff]
        %v1781 = vld [vmem:[%s9] sm:$0x1]
        %v1783 = vlaneseq
        %v1784 = vshrl.u32 %v1783, 7
        %v1785 = vsub.s32 0, %v1784
        %v1786 = vrot.slane %v1781, %v1785
        %v1789 = vsel %vm618, %v1776, 0
        %1791 = vmatprep.subr.mxu0 0.0
        %1792 = vmatpush1.msra.mxu0 0.0
        %1793 = vmatprep.subr.mxu0 0.0
        %1794 = vmatpush1.msra.mxu0 0.0
        %1795 = vmatprep.subr.mxu0 0.0
        %1796 = vmatpush1.msra.mxu0 0.0
        %1797 = vmatprep.subr.mxu0 0.0
        %1798 = vmatpush1.msra.mxu0 0.0
        %1799 = vmatprep.subr.mxu0 0.0
        %1800 = vmatpush1.msra.mxu0 0.0
        %1801 = vmatprep.subr.mxu0 0.0
        %1802 = vmatpush1.msra.mxu0 0.0
        %1803 = vmatprep.subr.mxu0 0.0
        %1804 = vmatpush1.msra.mxu0 0.0
        %1805 = vmatprep.subr.mxu0 0.0
        %1806 = vmatpush1.msra.mxu0 0.0
        %1807 = vmatprep.subr.mxu0 0.0
        %1808 = vmatpush1.msra.mxu0 0.0
        %1809 = vmatprep.subr.mxu0 0.0
        %1810 = vmatpush1.msra.mxu0 0.0
        %1811 = vmatprep.subr.mxu0 0.0
        %1812 = vmatpush1.msra.mxu0 0.0
        %1813 = vmatprep.subr.mxu0 0.0
        %1814 = vmatpush1.msra.mxu0 0.0
        %1815 = vmatprep.subr.mxu0 0.0
        %1816 = vmatpush1.msra.mxu0 %v1780
        %1817 = vmatprep.subr.mxu0 0.0
        %1818 = vmatpush1.msra.mxu0 %v1779
        %1819 = vmatprep.subr.mxu0 0.0
        %1820 = vmatpush1.msra.mxu0 %v1778
        %1821 = vmatprep.subr.mxu0 0.0
        %1822 = vmatpush1.msra.mxu0 %v1777
        %1823 = vmatprep.subr.mxu0 0.0
        %1824 = vmatpush2.msra.mxu0 0.0
        %1825 = vmatprep.subr.mxu0 0.0
        %1826 = vmatpush2.msra.mxu0 0.0
        %1827 = vmatprep.subr.mxu0 0.0
        %1828 = vmatpush2.msra.mxu0 0.0
        %1829 = vmatprep.subr.mxu0 0.0
        %1830 = vmatpush2.msra.mxu0 0.0
        %1831 = vmatprep.subr.mxu0 0.0
        %1832 = vmatpush2.msra.mxu0 0.0
        %1833 = vmatprep.subr.mxu0 0.0
        %1834 = vmatpush2.msra.mxu0 0.0
        %1835 = vmatprep.subr.mxu0 0.0
        %1836 = vmatpush2.msra.mxu0 0.0
        %1837 = vmatprep.subr.mxu0 0.0
        %1838 = vmatpush2.msra.mxu0 0.0
        %1839 = vmatprep.subr.mxu0 0.0
        %1840 = vmatpush2.msra.mxu0 0.0
        %1841 = vmatprep.subr.mxu0 0.0
        %1842 = vmatpush2.msra.mxu0 0.0
        %1843 = vmatprep.subr.mxu0 0.0
        %1844 = vmatpush2.msra.mxu0 0.0
        %1845 = vmatprep.subr.mxu0 0.0
        %1846 = vmatpush2.msra.mxu0 0.0
        %1847 = vmatprep.subr.mxu0 0.0
        %1848 = vmatpush2.msra.mxu0 0.0
        %1849 = vmatprep.subr.mxu0 0.0
        %1850 = vmatpush2.msra.mxu0 0.0
        %1851 = vmatprep.subr.mxu0 0.0
        %1852 = vmatpush2.msra.mxu0 0.0
        %1853 = vmatprep.subr.mxu0 0.0
        %1854 = vmatpush2.msra.mxu0 0.0
        %1855 = vmatprep.mubr.f32.mxu0 0.0
        %1856 = vmatmul.mubr.f32.gmra.mxu0 %v1789
        %v1857 = vpop.f32.mrf.mxu0
        %v1858 = vadd.f32 %v1786, %v1857
        %v1859 = vpop.f32.mrf.mxu0
        %1860 = vdwg.mxu0
        %v1861 = vmax.f32 %v1858, 0.0
        %v1862 = vld [vmem:[%s10] sm:$0xff]
        %v1863 = vld [vmem:[%s10 + $0x8] sm:$0xff]
        %v1864 = vld [vmem:[%s10 + $0x10] sm:$0xff]
        %v1865 = vld [vmem:[%s10 + $0x18] sm:$0xff]
        %v1866 = vld [vmem:[%s10 + $0x20] sm:$0xff]
        %v1867 = vld [vmem:[%s10 + $0x28] sm:$0xff]
        %v1868 = vld [vmem:[%s10 + $0x30] sm:$0xff]
        %v1869 = vld [vmem:[%s10 + $0x38] sm:$0xff]
        %v1870 = vld [vmem:[%s11] sm:$0x1]
        %v1872 = vlaneseq
        %v1873 = vshrl.u32 %v1872, 7
        %v1874 = vsub.s32 0, %v1873
        %v1875 = vrot.slane %v1870, %v1874
        %vm1877 = vcmask 523264
        %v1879 = vsel %vm1877, %v1861, 0
        %1881 = vmatprep.subr.mxu0 0.0
        %1882 = vmatpush1.msra.mxu0 0.0
        %1883 = vmatprep.subr.mxu0 0.0
        %1884 = vmatpush1.msra.mxu0 0.0
        %1885 = vmatprep.subr.mxu0 0.0
        %1886 = vmatpush1.msra.mxu0 0.0
        %1887 = vmatprep.subr.mxu0 0.0
        %1888 = vmatpush1.msra.mxu0 0.0
        %1889 = vmatprep.subr.mxu0 0.0
        %1890 = vmatpush1.msra.mxu0 0.0
        %1891 = vmatprep.subr.mxu0 0.0
        %1892 = vmatpush1.msra.mxu0 0.0
        %1893 = vmatprep.subr.mxu0 0.0
        %1894 = vmatpush1.msra.mxu0 0.0
        %1895 = vmatprep.subr.mxu0 0.0
        %1896 = vmatpush1.msra.mxu0 0.0
        %1897 = vmatprep.subr.mxu0 0.0
        %1898 = vmatpush1.msra.mxu0 %v1869
        %1899 = vmatprep.subr.mxu0 0.0
        %1900 = vmatpush1.msra.mxu0 %v1868
        %1901 = vmatprep.subr.mxu0 0.0
        %1902 = vmatpush1.msra.mxu0 %v1867
        %1903 = vmatprep.subr.mxu0 0.0
        %1904 = vmatpush1.msra.mxu0 %v1866
        %1905 = vmatprep.subr.mxu0 0.0
        %1906 = vmatpush1.msra.mxu0 %v1865
        %1907 = vmatprep.subr.mxu0 0.0
        %1908 = vmatpush1.msra.mxu0 %v1864
        %1909 = vmatprep.subr.mxu0 0.0
        %1910 = vmatpush1.msra.mxu0 %v1863
        %1911 = vmatprep.subr.mxu0 0.0
        %1912 = vmatpush1.msra.mxu0 %v1862
        %1913 = vmatprep.subr.mxu0 0.0
        %1914 = vmatpush2.msra.mxu0 0.0
        %1915 = vmatprep.subr.mxu0 0.0
        %1916 = vmatpush2.msra.mxu0 0.0
        %1917 = vmatprep.subr.mxu0 0.0
        %1918 = vmatpush2.msra.mxu0 0.0
        %1919 = vmatprep.subr.mxu0 0.0
        %1920 = vmatpush2.msra.mxu0 0.0
        %1921 = vmatprep.subr.mxu0 0.0
        %1922 = vmatpush2.msra.mxu0 0.0
        %1923 = vmatprep.subr.mxu0 0.0
        %1924 = vmatpush2.msra.mxu0 0.0
        %1925 = vmatprep.subr.mxu0 0.0
        %1926 = vmatpush2.msra.mxu0 0.0
        %1927 = vmatprep.subr.mxu0 0.0
        %1928 = vmatpush2.msra.mxu0 0.0
        %1929 = vmatprep.subr.mxu0 0.0
        %1930 = vmatpush2.msra.mxu0 0.0
        %1931 = vmatprep.subr.mxu0 0.0
        %1932 = vmatpush2.msra.mxu0 0.0
        %1933 = vmatprep.subr.mxu0 0.0
        %1934 = vmatpush2.msra.mxu0 0.0
        %1935 = vmatprep.subr.mxu0 0.0
        %1936 = vmatpush2.msra.mxu0 0.0
        %1937 = vmatprep.subr.mxu0 0.0
        %1938 = vmatpush2.msra.mxu0 0.0
        %1939 = vmatprep.subr.mxu0 0.0
        %1940 = vmatpush2.msra.mxu0 0.0
        %1941 = vmatprep.subr.mxu0 0.0
        %1942 = vmatpush2.msra.mxu0 0.0
        %1943 = vmatprep.subr.mxu0 0.0
        %1944 = vmatpush2.msra.mxu0 0.0
        %1945 = vmatprep.mubr.f32.mxu0 0.0
        %1946 = vmatmul.mubr.f32.gmra.mxu0 %v1879
        %v1947 = vpop.f32.mrf.mxu0
        %v1948 = vadd.f32 %v1875, %v1947
        %v1949 = vpop.f32.mrf.mxu0
        %1950 = vdwg.mxu0
        %v1951 = vadd.f32 %v1776, %v1948
        %v1952 = vsel %vm618, %v1951, 0.0
        %1953 = vadd.xlane.f32.xlu0 %v1952
        %v1954 = vpop.xlane.xlu0 %1953
        %v1955 = vmul.f32 %v1954, %v1750
        %v1956 = vsub.f32 %v1951, %v1955
        %v1957 = vmul.f32 %v1956, %v1956
        %v1958 = vsel %vm618, %v1957, 0.0
        %1959 = vadd.xlane.f32.xlu0 %v1958
        %v1960 = vpop.xlane.xlu0 %1959
        %v1961 = vmul.f32 %v1960, %v1750
        %v1962 = vadd.f32 %v1961, 1e-05
        %v1963 = vrsqrt.pop %v1962
        %v1964 = vmul.f32 %v1956, %v1963
        %v1965 = vld [vmem:[%s14] sm:$0x1]
        %v1967 = vlaneseq
        %v1968 = vshrl.u32 %v1967, 7
        %v1969 = vsub.s32 0, %v1968
        %v1970 = vrot.slane %v1965, %v1969
        %v1972 = vmul.f32 %v1964, %v1970
        %v1973 = vld [vmem:[%s15] sm:$0x1]
        %v1975 = vlaneseq
        %v1976 = vshrl.u32 %v1975, 7
        %v1977 = vsub.s32 0, %v1976
        %v1978 = vrot.slane %v1973, %v1977
        %v1980 = vadd.f32 %v1972, %v1978
        %1981 = vst.msk [vmem:[%s604] sm:$0xff] %vm618, %v1980
        %s1982 = sand.u32 %s406, 1
        %s1983 = scalar_lea.sflag [#allocation4], %s1982
        %s1984 = sand.u32 %s406, 1
        %s1985 = smul.addr %s1984, 8
        %s1986 = scalar_lea.vmem [#allocation8], %s1985
        // Predicated region
        $region97: #{tpu_custom_call.1} parent=83 // pred_check
          %p1987 = pneg %p416
        $region98: #{tpu_custom_call.1} parent=83 // pred_check_branch
          %1989 = sbr.rel (%p1987) target = $region100
        $region99: #{tpu_custom_call.1} parent=83 // pred_region
          %s1991 = ssub.s32 128, 128
          %1992 = vsyncadd %s1983, %s1991
          %s1993 = sadd.s32 %s41, %s40
          %s1994 = smul.addr %s1993, 128
          %s1995 = scalar_lea.hbm %s16, %s1994
          %s1997 = sshll.u32 %s1986, 4
          %s1998 = int_to_ptr.vmem [resolvable:$true] %s1997
          %2000 = dma.vmem_to_hbm [thread:$0]  %s1998, 128, %s1995, %s1983
        $region100: #{tpu_custom_call.1} parent=83 // pred_fallthru
          _
      $region84: #{tpu_custom_call.1} parent=5 // pred_fallthru
        _
      %p2001 = scmp.le.s32.totalorder 2, %s31
      // Predicated region
      $region101: #{tpu_custom_call.1} parent=5 // pred_check
        %p2002 = pneg %p2001
      $region102: #{tpu_custom_call.1} parent=5 // pred_check_branch
        %2004 = sbr.rel (%p2002) target = $region104
      $region103: #{tpu_custom_call.1} parent=5 // pred_region
        %s2005 = ssub.s32 %s31, 2
        // Predicated region
        $region105: #{tpu_custom_call.1} parent=103 // pred_check
          %p2006 = pneg %p422
        $region106: #{tpu_custom_call.1} parent=103 // pred_check_branch
          %2008 = sbr.rel (%p2006) target = $region108
        $region107: #{tpu_custom_call.1} parent=103 // pred_region
          %s2009 = sand.u32 %s407, 1
          %s2010 = scalar_lea.sflag [#allocation4], %s2009
          %s2011 = sand.u32 %s407, 1
          %s2012 = smul.addr %s2011, 8
          %s2013 = scalar_lea.vmem [#allocation8], %s2012
          %2014 = dma.done %s2010, 128
        $region108: #{tpu_custom_call.1} parent=103 // pred_fallthru
          _
      $region104: #{tpu_custom_call.1} parent=5 // pred_fallthru
        _
    $region6: #{tpu_custom_call.1} parent=1 // loop_footer
      %s35 = sadd.s32 1, %s31
    $region7: #{tpu_custom_call.1} parent=1 // loop_footer_branch
      %30 = sbr.rel target = $region3
    $region8: #{tpu_custom_call.1} parent=1 // loop_exit
      _
    %2015 = vsyncpa [#allocation3], 1
    %s2016 = scalar_lea.sflag [#allocation3], 1
    %2017 = vsyncpa %s2016, 1
    %2018 = vsyncpa [#allocation6], 1
    %s2019 = scalar_lea.sflag [#allocation6], 1
    %2020 = vsyncpa %s2019, 1
    %2021 = vsyncpa [#allocation4], 1
    %s2022 = scalar_lea.sflag [#allocation4], 1
    %2023 = vsyncpa %s2022, 1

</llo_original>
